<compile_context>
chip_gen: v7x
topology: tpu7x:2x2x1
jax: 0.10.0
libtpu: 0.0.40
codegen_flags: <defaults>
</compile_context>

<pallas_src>
import jax
import jax.numpy as jnp
from jax.experimental import pallas as pl
from jax.experimental.pallas import tpu as pltpu

EPS = 1e-5  # nn.BatchNorm2d default


# ------------------------------ Pallas kernels ----------------------------- #
def _conv_stats_kernel(xcol_ref, w_ref, y_ref, psum_ref):
    # xcol_ref : (TP, 9*C)  im2col'd input tile (tap-major columns)
    # w_ref    : (9*C, C)   flattened conv weight (resident across the grid)
    # y_ref    : (TP, C)    raw (pre-BN) conv output tile
    # psum_ref : (1, 2, C)  this tile's per-channel [sum, sum_of_squares]
    acc = jnp.dot(xcol_ref[...], w_ref[...], preferred_element_type=jnp.float32)
    y_ref[...] = acc.astype(y_ref.dtype)
    # BN statistics partials computed while acc is still in VMEM (single pass).
    psum_ref[:, 0:1, :] = jnp.sum(acc, axis=0, keepdims=True).reshape(1, 1, -1)
    psum_ref[:, 1:2, :] = jnp.sum(acc * acc, axis=0, keepdims=True).reshape(1, 1, -1)


def _bn_act_kernel(y_ref, scale_ref, shift_ref, out_ref):
    # relu(y * scale + shift)  -- stage-1 epilogue (no residual stream at all)
    out_ref[...] = jnp.maximum(
        y_ref[...] * scale_ref[...] + shift_ref[...], 0.0).astype(out_ref.dtype)


def _bn_act_res_kernel(y_ref, res_ref, scale_ref, shift_ref, out_ref):
    # relu(y * scale + shift + residual)  -- stage-2 epilogue
    out_ref[...] = jnp.maximum(
        y_ref[...] * scale_ref[...] + shift_ref[...] + res_ref[...], 0.0
    ).astype(out_ref.dtype)


# ------------------------------ pallas_call wrappers ----------------------- #
def _compiler_params():
    return pltpu.CompilerParams(
        dimension_semantics=("parallel",),
        vmem_limit_bytes=64 * 1024 * 1024)


def conv3x3_stats(xcol, w_flat, *, tile_p):
    """One (TP, 9C) @ (9C, C) contraction per tile + per-tile BN stat partials."""
    P, K = xcol.shape
    C = w_flat.shape[1]
    assert P % tile_p == 0
    G = P // tile_p
    itemsize = xcol.dtype.itemsize
    cost = pl.CostEstimate(
        flops=2 * P * K * C,
        transcendentals=0,
        bytes_accessed=P * K * itemsize + K * C * itemsize + (P * C + G * 2 * C) * 4)
    return pl.pallas_call(
        _conv_stats_kernel,
        out_shape=(jax.ShapeDtypeStruct((P, C), jnp.float32),
                   jax.ShapeDtypeStruct((G, 2, C), jnp.float32)),
        grid_spec=pltpu.PrefetchScalarGridSpec(
            num_scalar_prefetch=0,
            grid=(G,),
            in_specs=[pl.BlockSpec((tile_p, K), lambda i: (i, 0)),
                      pl.BlockSpec((K, C), lambda i: (0, 0))],
            out_specs=(pl.BlockSpec((tile_p, C), lambda i: (i, 0)),
                       pl.BlockSpec((1, 2, C), lambda i: (i, 0, 0)))),
        compiler_params=_compiler_params(),
        cost_estimate=cost,
    )(xcol, w_flat)


def bn_act(y, scale, shift, residual=None, *, tile_p):
    """Tiled BN-affine (+optional residual) + ReLU epilogue."""
    P, C = y.shape
    assert P % tile_p == 0
    G = P // tile_p
    row = pl.BlockSpec((tile_p, C), lambda i: (i, 0))
    vec = pl.BlockSpec((1, C), lambda i: (0, 0))
    if residual is None:
        kernel, in_specs, args = _bn_act_kernel, [row, vec, vec], (y, scale, shift)
        nbytes = 2 * P * C * 4
    else:
        kernel = _bn_act_res_kernel
        in_specs = [row, row, vec, vec]
        args = (y, residual, scale, shift)
        nbytes = 3 * P * C * 4
    cost = pl.CostEstimate(flops=3 * P * C, transcendentals=0, bytes_accessed=nbytes)
    return pl.pallas_call(
        kernel,
        out_shape=jax.ShapeDtypeStruct((P, C), jnp.float32),
        grid_spec=pltpu.PrefetchScalarGridSpec(
            num_scalar_prefetch=0, grid=(G,), in_specs=in_specs, out_specs=row),
        compiler_params=_compiler_params(),
        cost_estimate=cost,
    )(*args)


# ------------------------------- JAX glue ---------------------------------- #
def _im2col_3x3(x_nhwc):
    """(N,H,W,C) -> (N*H*W, 9*C); columns ordered tap-major (kh*3+kw), channel minor.

    TODO(synk): this still materializes ~9x the activation bytes in HBM. Next
    step is to drop it: pass the zero-padded NHWC array with memory_space=pl.ANY
    and manually DMA haloed (rows+2, W+2, C) windows into a VMEM double buffer
    (pltpu.make_async_copy + DMA semaphores), forming the 9 taps in-kernel.
    """
    N, H, W, C = x_nhwc.shape
    xp = jnp.pad(x_nhwc, ((0, 0), (1, 1), (1, 1), (0, 0)))
    cols = [xp[:, kh:kh + H, kw:kw + W, :] for kh in range(3) for kw in range(3)]
    return jnp.stack(cols, axis=3).reshape(N * H * W, 9 * C)


def _w_to_mat(w_oihw):
    """(Cout, Cin, 3, 3) torch layout -> (9*Cin, Cout), rows ordered (kh, kw, ci)."""
    co, ci = w_oihw.shape[0], w_oihw.shape[1]
    return jnp.transpose(w_oihw, (2, 3, 1, 0)).reshape(9 * ci, co)


def _bn_scale_shift(psums, gamma, beta, count):
    """Fold per-tile (sum, sum_sq) partials into BN scale/shift, shape (1, C)."""
    sums = jnp.sum(psums.astype(jnp.float32), axis=0)        # (2, C)
    mean = sums[0] / count
    var = sums[1] / count - mean * mean                       # biased var (training BN)
    scale = gamma.astype(jnp.float32) * jax.lax.rsqrt(var + EPS)
    shift = beta.astype(jnp.float32) - mean * scale
    return scale.reshape(1, -1), shift.reshape(1, -1)


def _pick_tile(P, requested=256):
    """Largest tile <= requested that divides P (multiple of 8), else full P."""
    t = min(requested, P)
    while t > 8 and P % t != 0:
        t //= 2
    return t if P % t == 0 else P


def residual_block(x_nchw, params, *, tile_p=256, matmul_dtype=jnp.float32):
    """Forward pass of ResidualBlock.  Input/output: NCHW float32.

    matmul_dtype=jnp.bfloat16 is recommended on v6e/v7x (half the conv DMA
    bytes, 2x MXU throughput); the demo keeps f32 to match the f32 reference.
    On v7x (64 MiB VMEM) use a smaller tile_p / larger C budget accordingly.
    """
    w1, b1, g1, be1, w2, b2, g2, be2 = params
    # Conv biases are exactly cancelled by the training-mode BN mean subtraction
    # that immediately follows each conv -> intentionally unused (dead work).
    del b1, b2

    x = jnp.transpose(x_nchw, (0, 2, 3, 1)).astype(jnp.float32)   # NHWC
    N, H, W, C = x.shape
    P = N * H * W
    tp = _pick_tile(P, tile_p)

    # ---- stage 1: relu(bn1(conv1(x))) --------------------------------------
    y1, psum1 = conv3x3_stats(_im2col_3x3(x).astype(matmul_dtype),
                              _w_to_mat(w1).astype(matmul_dtype), tile_p=tp)
    s1, t1 = _bn_scale_shift(psum1, g1, be1, P)
    out1 = bn_act(y1, s1, t1, tile_p=tp)

    # ---- stage 2: relu(bn2(conv2(out1)) + x) --------------------------------
    # TODO(synk): fuse this stage-1 normalize into the stage-2 conv pass by
    # reading haloed raw-conv1 tiles and applying (scale1, shift1, relu) per tap
    # in-kernel with padding-aware masking, removing the out1 HBM round-trip.
    y2, psum2 = conv3x3_stats(
        _im2col_3x3(out1.reshape(N, H, W, C)).astype(matmul_dtype),
        _w_to_mat(w2).astype(matmul_dtype), tile_p=tp)
    s2, t2 = _bn_scale_shift(psum2, g2, be2, P)
    out = bn_act(y2, s2, t2, residual=x.reshape(P, C), tile_p=tp)

    # TODO(synk): with C=4 the (P, C) tiles only use 4/128 lanes; for genuinely
    # small C a lane-dense (N*H, W*C) layout with 9 VPU shifted multiply-adds
    # would beat the 4-wide MXU path on every TPU generation.
    return jnp.transpose(out.reshape(N, H, W, C), (0, 3, 1, 2))


# --------------------------- pure-JAX reference ----------------------------- #
def _reference(x, params):
    w1, b1, g1, be1, w2, b2, g2, be2 = params

    def conv(x, w, b):
        y = jax.lax.conv_general_dilated(
            x, w, (1, 1), "SAME", dimension_numbers=("NCHW", "OIHW", "NCHW"))
        return y + b[None, :, None, None]

    def bn(x, g, be):
        mean = jnp.mean(x, axis=(0, 2, 3), keepdims=True)
        var = jnp.mean(jnp.square(x - mean), axis=(0, 2, 3), keepdims=True)
        return ((x - mean) * jax.lax.rsqrt(var + EPS)
                * g[None, :, None, None] + be[None, :, None, None])

    out = jax.nn.relu(bn(conv(x, w1, b1), g1, be1))
    out = bn(conv(out, w2, b2), g2, be2) + x
    return jax.nn.relu(out)


# --------------------------------- main ------------------------------------- #
if __name__ == "__main__":
    key = jax.random.PRNGKey(0)
    N, C, H, W = 2, 4, 16, 16
    ks = jax.random.split(key, 9)

    x = jax.random.normal(ks[0], (N, C, H, W), jnp.float32)
    # deterministic synthetic parameters (shapes per nn.Conv2d / nn.BatchNorm2d)
    w1 = 0.1 * jax.random.normal(ks[1], (C, C, 3, 3), jnp.float32)
    b1 = 0.1 * jax.random.normal(ks[2], (C,), jnp.float32)
    g1 = 1.0 + 0.1 * jax.random.normal(ks[3], (C,), jnp.float32)
    be1 = 0.1 * jax.random.normal(ks[4], (C,), jnp.float32)
    w2 = 0.1 * jax.random.normal(ks[5], (C, C, 3, 3), jnp.float32)
    b2 = 0.1 * jax.random.normal(ks[6], (C,), jnp.float32)
    g2 = 1.0 + 0.1 * jax.random.normal(ks[7], (C,), jnp.float32)
    be2 = 0.1 * jax.random.normal(ks[8], (C,), jnp.float32)
    params = (w1, b1, g1, be1, w2, b2, g2, be2)

    out = jax.jit(residual_block)(x, params)
    out = jax.block_until_ready(out)

    ref = _reference(x, params)
    assert out.shape == x.shape
    err = float(jnp.max(jnp.abs(out - ref)))
    assert jnp.allclose(out, ref, rtol=2e-4, atol=2e-4), f"max abs err {err}"
    print("KERNEL_OK")
</pallas_src>

<mosaic_0001>
module attributes {stable_mosaic.version = 11 : i64} {
  func.func @_conv_stats_kernel(%arg0: i32, %arg1: memref<256x36xf32, #tpu.memory_space<vmem>>, %arg2: memref<36x4xf32, #tpu.memory_space<vmem>>, %arg3: memref<256x4xf32, #tpu.memory_space<vmem>>, %arg4: memref<1x2x4xf32, #tpu.memory_space<vmem>>) attributes {dimension_semantics = [#tpu.dimension_semantics<parallel>], iteration_bounds = array<i64: 2>, scalar_prefetch = 0 : i64, scratch_operands = 0 : i64, tpu.core_type = #tpu.core_type<tc>, window_params = [{transform_indices = @transform_0, window_bounds = array<i64: 256, 36>}, {pipeline_mode = #tpu.pipeline_mode<synchronous>, transform_indices = @transform_1, window_bounds = array<i64: 36, 4>}, {transform_indices = @transform_2, window_bounds = array<i64: 256, 4>}, {transform_indices = @transform_3, window_bounds = array<i64: 1, 2, 4>}]} {
    %c0 = arith.constant 0 : index
    %c0_0 = arith.constant 0 : index
    %0 = vector.load %arg1[%c0, %c0_0] : memref<256x36xf32, #tpu.memory_space<vmem>>, vector<256x36xf32>
    %c0_1 = arith.constant 0 : index
    %c0_2 = arith.constant 0 : index
    %1 = vector.load %arg2[%c0_1, %c0_2] : memref<36x4xf32, #tpu.memory_space<vmem>>, vector<36x4xf32>
    %cst = arith.constant dense<0.000000e+00> : vector<256x4xf32>
    %2 = tpu.matmul %0, %1, %cst {dimension_numbers = #tpu.dot_dimension_numbers<[1], [0], [0], [1], [0, 0, 1, 1], [], []>} : vector<256x36xf32>, vector<36x4xf32>, vector<256x4xf32> -> vector<256x4xf32>
    %c0_3 = arith.constant 0 : index
    %c0_4 = arith.constant 0 : index
    %3 = vector.load %arg3[%c0_3, %c0_4] : memref<256x4xf32, #tpu.memory_space<vmem>>, vector<256x4xf32>
    tpu.vector_store %arg3[%c0_3, %c0_4], %2 {strides = array<i32>} : memref<256x4xf32, #tpu.memory_space<vmem>>, vector<256x4xf32>,
    %cst_5 = arith.constant dense<0.000000e+00> : vector<4xf32>
    %4 = vector.multi_reduction <add>, %2, %cst_5 [0] : vector<256x4xf32> to vector<4xf32>
    %5 = vector.shape_cast %4 : vector<4xf32> to vector<1x4xf32>
    %6 = vector.shape_cast %5 : vector<1x4xf32> to vector<1x1x4xf32>
    %c0_6 = arith.constant 0 : index
    %c0_7 = arith.constant 0 : index
    %c0_8 = arith.constant 0 : index
    %7 = vector.load %arg4[%c0_6, %c0_7, %c0_8] : memref<1x2x4xf32, #tpu.memory_space<vmem>>, vector<1x1x4xf32>
    tpu.vector_store %arg4[%c0_6, %c0_7, %c0_8], %6 {strides = array<i32>} : memref<1x2x4xf32, #tpu.memory_space<vmem>>, vector<1x1x4xf32>,
    %8 = arith.mulf %2, %2 : vector<256x4xf32>
    %cst_9 = arith.constant dense<0.000000e+00> : vector<4xf32>
    %9 = vector.multi_reduction <add>, %8, %cst_9 [0] : vector<256x4xf32> to vector<4xf32>
    %10 = vector.shape_cast %9 : vector<4xf32> to vector<1x4xf32>
    %11 = vector.shape_cast %10 : vector<1x4xf32> to vector<1x1x4xf32>
    %c0_10 = arith.constant 0 : index
    %c1 = arith.constant 1 : index
    %c0_11 = arith.constant 0 : index
    %12 = vector.load %arg4[%c0_10, %c1, %c0_11] : memref<1x2x4xf32, #tpu.memory_space<vmem>>, vector<1x1x4xf32>
    tpu.vector_store %arg4[%c0_10, %c1, %c0_11], %11 {strides = array<i32>} : memref<1x2x4xf32, #tpu.memory_space<vmem>>, vector<1x1x4xf32>,
    return
  }
  func.func @transform_0(%arg0: i32) -> (i32, i32) {
    %c0_i32 = arith.constant 0 : i32
    %c0_i32_0 = arith.constant 0 : i32
    return %arg0, %c0_i32 : i32, i32
  }
  func.func @transform_1(%arg0: i32) -> (i32, i32) {
    %c0_i32 = arith.constant 0 : i32
    %c0_i32_0 = arith.constant 0 : i32
    %c0_i32_1 = arith.constant 0 : i32
    return %c0_i32, %c0_i32_0 : i32, i32
  }
  func.func @transform_2(%arg0: i32) -> (i32, i32) {
    %c0_i32 = arith.constant 0 : i32
    %c0_i32_0 = arith.constant 0 : i32
    return %arg0, %c0_i32 : i32, i32
  }
  func.func @transform_3(%arg0: i32) -> (i32, i32, i32) {
    %c0_i32 = arith.constant 0 : i32
    %c0_i32_0 = arith.constant 0 : i32
    %c0_i32_1 = arith.constant 0 : i32
    return %arg0, %c0_i32, %c0_i32_0 : i32, i32, i32
  }
}

module attributes {stable_mosaic.version = 11 : i64} {
  func.func @_bn_act_kernel(%arg0: i32, %arg1: memref<256x4xf32, #tpu.memory_space<vmem>>, %arg2: memref<1x4xf32, #tpu.memory_space<vmem>>, %arg3: memref<1x4xf32, #tpu.memory_space<vmem>>, %arg4: memref<256x4xf32, #tpu.memory_space<vmem>>) attributes {dimension_semantics = [#tpu.dimension_semantics<parallel>], iteration_bounds = array<i64: 2>, scalar_prefetch = 0 : i64, scratch_operands = 0 : i64, tpu.core_type = #tpu.core_type<tc>, window_params = [{transform_indices = @transform_0, window_bounds = array<i64: 256, 4>}, {pipeline_mode = #tpu.pipeline_mode<synchronous>, transform_indices = @transform_1, window_bounds = array<i64: 1, 4>}, {pipeline_mode = #tpu.pipeline_mode<synchronous>, transform_indices = @transform_2, window_bounds = array<i64: 1, 4>}, {transform_indices = @transform_3, window_bounds = array<i64: 256, 4>}]} {
    %c0 = arith.constant 0 : index
    %c0_0 = arith.constant 0 : index
    %0 = vector.load %arg1[%c0, %c0_0] : memref<256x4xf32, #tpu.memory_space<vmem>>, vector<256x4xf32>
    %c0_1 = arith.constant 0 : index
    %c0_2 = arith.constant 0 : index
    %1 = vector.load %arg2[%c0_1, %c0_2] : memref<1x4xf32, #tpu.memory_space<vmem>>, vector<1x4xf32>
    %2 = vector.broadcast %1 : vector<1x4xf32> to vector<256x4xf32>
    %3 = arith.mulf %0, %2 : vector<256x4xf32>
    %c0_3 = arith.constant 0 : index
    %c0_4 = arith.constant 0 : index
    %4 = vector.load %arg3[%c0_3, %c0_4] : memref<1x4xf32, #tpu.memory_space<vmem>>, vector<1x4xf32>
    %5 = vector.broadcast %4 : vector<1x4xf32> to vector<256x4xf32>
    %6 = arith.addf %3, %5 : vector<256x4xf32>
    %cst = arith.constant 0.000000e+00 : f32
    %7 = vector.broadcast %cst : f32 to vector<256x4xf32>
    %8 = arith.maximumf %6, %7 : vector<256x4xf32>
    %c0_5 = arith.constant 0 : index
    %c0_6 = arith.constant 0 : index
    %9 = vector.load %arg4[%c0_5, %c0_6] : memref<256x4xf32, #tpu.memory_space<vmem>>, vector<256x4xf32>
    tpu.vector_store %arg4[%c0_5, %c0_6], %8 {strides = array<i32>} : memref<256x4xf32, #tpu.memory_space<vmem>>, vector<256x4xf32>,
    return
  }
  func.func @transform_0(%arg0: i32) -> (i32, i32) {
    %c0_i32 = arith.constant 0 : i32
    %c0_i32_0 = arith.constant 0 : i32
    return %arg0, %c0_i32 : i32, i32
  }
  func.func @transform_1(%arg0: i32) -> (i32, i32) {
    %c0_i32 = arith.constant 0 : i32
    %c0_i32_0 = arith.constant 0 : i32
    %c0_i32_1 = arith.constant 0 : i32
    return %c0_i32, %c0_i32_0 : i32, i32
  }
  func.func @transform_2(%arg0: i32) -> (i32, i32) {
    %c0_i32 = arith.constant 0 : i32
    %c0_i32_0 = arith.constant 0 : i32
    %c0_i32_1 = arith.constant 0 : i32
    return %c0_i32, %c0_i32_0 : i32, i32
  }
  func.func @transform_3(%arg0: i32) -> (i32, i32) {
    %c0_i32 = arith.constant 0 : i32
    %c0_i32_0 = arith.constant 0 : i32
    return %arg0, %c0_i32 : i32, i32
  }
}

module attributes {stable_mosaic.version = 11 : i64} {
  func.func @_bn_act_res_kernel(%arg0: i32, %arg1: memref<256x4xf32, #tpu.memory_space<vmem>>, %arg2: memref<256x4xf32, #tpu.memory_space<vmem>>, %arg3: memref<1x4xf32, #tpu.memory_space<vmem>>, %arg4: memref<1x4xf32, #tpu.memory_space<vmem>>, %arg5: memref<256x4xf32, #tpu.memory_space<vmem>>) attributes {dimension_semantics = [#tpu.dimension_semantics<parallel>], iteration_bounds = array<i64: 2>, scalar_prefetch = 0 : i64, scratch_operands = 0 : i64, tpu.core_type = #tpu.core_type<tc>, window_params = [{transform_indices = @transform_0, window_bounds = array<i64: 256, 4>}, {transform_indices = @transform_1, window_bounds = array<i64: 256, 4>}, {pipeline_mode = #tpu.pipeline_mode<synchronous>, transform_indices = @transform_2, window_bounds = array<i64: 1, 4>}, {pipeline_mode = #tpu.pipeline_mode<synchronous>, transform_indices = @transform_3, window_bounds = array<i64: 1, 4>}, {transform_indices = @transform_4, window_bounds = array<i64: 256, 4>}]} {
    %c0 = arith.constant 0 : index
    %c0_0 = arith.constant 0 : index
    %0 = vector.load %arg1[%c0, %c0_0] : memref<256x4xf32, #tpu.memory_space<vmem>>, vector<256x4xf32>
    %c0_1 = arith.constant 0 : index
    %c0_2 = arith.constant 0 : index
    %1 = vector.load %arg3[%c0_1, %c0_2] : memref<1x4xf32, #tpu.memory_space<vmem>>, vector<1x4xf32>
    %2 = vector.broadcast %1 : vector<1x4xf32> to vector<256x4xf32>
    %3 = arith.mulf %0, %2 : vector<256x4xf32>
    %c0_3 = arith.constant 0 : index
    %c0_4 = arith.constant 0 : index
    %4 = vector.load %arg4[%c0_3, %c0_4] : memref<1x4xf32, #tpu.memory_space<vmem>>, vector<1x4xf32>
    %5 = vector.broadcast %4 : vector<1x4xf32> to vector<256x4xf32>
    %6 = arith.addf %3, %5 : vector<256x4xf32>
    %c0_5 = arith.constant 0 : index
    %c0_6 = arith.constant 0 : index
    %7 = vector.load %arg2[%c0_5, %c0_6] : memref<256x4xf32, #tpu.memory_space<vmem>>, vector<256x4xf32>
    %8 = arith.addf %6, %7 : vector<256x4xf32>
    %cst = arith.constant 0.000000e+00 : f32
    %9 = vector.broadcast %cst : f32 to vector<256x4xf32>
    %10 = arith.maximumf %8, %9 : vector<256x4xf32>
    %c0_7 = arith.constant 0 : index
    %c0_8 = arith.constant 0 : index
    %11 = vector.load %arg5[%c0_7, %c0_8] : memref<256x4xf32, #tpu.memory_space<vmem>>, vector<256x4xf32>
    tpu.vector_store %arg5[%c0_7, %c0_8], %10 {strides = array<i32>} : memref<256x4xf32, #tpu.memory_space<vmem>>, vector<256x4xf32>,
    return
  }
  func.func @transform_0(%arg0: i32) -> (i32, i32) {
    %c0_i32 = arith.constant 0 : i32
    %c0_i32_0 = arith.constant 0 : i32
    return %arg0, %c0_i32 : i32, i32
  }
  func.func @transform_1(%arg0: i32) -> (i32, i32) {
    %c0_i32 = arith.constant 0 : i32
    %c0_i32_0 = arith.constant 0 : i32
    return %arg0, %c0_i32 : i32, i32
  }
  func.func @transform_2(%arg0: i32) -> (i32, i32) {
    %c0_i32 = arith.constant 0 : i32
    %c0_i32_0 = arith.constant 0 : i32
    %c0_i32_1 = arith.constant 0 : i32
    return %c0_i32, %c0_i32_0 : i32, i32
  }
  func.func @transform_3(%arg0: i32) -> (i32, i32) {
    %c0_i32 = arith.constant 0 : i32
    %c0_i32_0 = arith.constant 0 : i32
    %c0_i32_1 = arith.constant 0 : i32
    return %c0_i32, %c0_i32_0 : i32, i32
  }
  func.func @transform_4(%arg0: i32) -> (i32, i32) {
    %c0_i32 = arith.constant 0 : i32
    %c0_i32_0 = arith.constant 0 : i32
    return %arg0, %c0_i32 : i32, i32
  }
}

</mosaic_0001>

<llo_original>
// kernel: residual_block.5
$region0: #{residual_block.5}
  #allocation0 [shape = 'u32[]', space=smem, size = 0x4, offset = 0x4, fixed_abs, tag = 'smem constant byte address 0x4 - core index']
  #allocation1 [shape = 'u32[144,128]{1,0:T(1,128)}', space=vmem, size = 0x12000, scoped, tag = 'internal scratch']
  %s0 = inlined_call_operand.hbm [shape: f32[512,4], index: 0, kind: input, shape index: {}]
  %s1 = inlined_call_operand.hbm [shape: f32[1,4], index: 1, kind: input, shape index: {}]
  %s2 = inlined_call_operand.hbm [shape: f32[1,4], index: 2, kind: input, shape index: {}]
  %s3 = inlined_call_operand.hbm [shape: f32[512,4], index: 3, kind: output, shape index: {}]
  %s4 = sld [smem:[#allocation0]]
  $region57: #{residual_block.5} parent=0
    _
  %s6 = ssub.s32 1, %s4
  %s7 = scalar_select 0, %s6, %s4
  $region1: #{residual_block.5} parent=0
    #allocation2 [shape = 'u8[262144]{0}', space=vmem, size = 0x40000, scoped, tag = 'input window, operand 0']
    #allocation3 [shape = 's32[2]{0}', space=sflag, size = 0x8, scoped, tag = 'scoped memory for residual_block.5']
    #allocation4 [shape = 's32[2]{0}', space=sflag, size = 0x8, scoped, tag = 'scoped memory for residual_block.5']
    #allocation5 [shape = 'u8[512]{0}', space=vmem, size = 0x400, scoped, tag = 'input window, operand 1, single buffered']
    #allocation6 [shape = 's32[1]{0}', space=sflag, size = 0x4, scoped, tag = 'scoped memory for residual_block.5']
    #allocation7 [shape = 'u8[512]{0}', space=vmem, size = 0x400, scoped, tag = 'input window, operand 2, single buffered']
    #allocation8 [shape = 'u8[262144]{0}', space=vmem, size = 0x40000, scoped, tag = 'output window, operand 0']
    %8 = vsyncpa [#allocation3], 0
    %s9 = scalar_lea.sflag [#allocation3], 1
    %10 = vsyncpa %s9, 0
    %11 = vsyncpa [#allocation6], 0
    %12 = vsyncpa [#allocation4], 0
    %s13 = scalar_lea.sflag [#allocation4], 1
    %14 = vsyncpa %s13, 0
    loop: start=0, step=1, limit=4
    $region2: #{residual_block.5} parent=1 // loop_pre_header
      _
    $region3: #{residual_block.5} parent=1 // loop_header
      %s16 = sphi 0, %s20
      %p17 = scmp.ge.s32.totalorder %s16, 4
      %s26 = sphi 0, %s28
      %s29 = sphi 0, %s26
      %s30 = sphi 0, %s29
      %s46 = sphi 0, %s30
      %s50 = sphi 0, %s50
      %s52 = sphi 0, %s50
      %s53 = sphi 0, %s52
      %s67 = sphi 0, %s53
      %s71 = sphi 0, %s71
      %s73 = sphi 0, %s71
      %s74 = sphi 0, %s73
      %s88 = sphi 0, %s74
      %s94 = sphi 0, %s96
      %s97 = sphi 0, %s94
      %s98 = sphi 0, %s97
      %s114 = sphi 0, %s98
    $region4: #{residual_block.5} parent=1 // loop_header_branch
      %19 = sbr.rel (%p17) target = $region8
    $region5: #{residual_block.5} parent=1 // loop_body
      %s21 = ssub.s32 %s16, 1
      %s22 = ssub.s32 %s16, 2
      %s23 = sadd.s32 %s16, 1
      %s24 = ssub.s32 %s16, %s23
      %p25 = scmp.eq.s32.totalorder %s24, 0
      %s27 = sadd.s32 %s26, 1
      %s28 = scalar_select %p25, %s26, %s27
      %p31 = pneg %p25
      %p32 = scmp.eq.s32.totalorder %s16, 1
      %p33 = por %p31, %p32
      %p34 = scmp.ne.s32.totalorder %s26, %s29
      %p35 = scmp.eq.s32.totalorder %s16, 0
      %p36 = por %p34, %p35
      %p37 = scmp.ne.s32.totalorder %s26, %s29
      %p38 = scmp.eq.s32.totalorder %s21, 1
      %p39 = por %p37, %p38
      %p40 = scmp.ne.s32.totalorder %s29, %s30
      %p41 = scmp.eq.s32.totalorder %s21, 0
      %p42 = por %p40, %p41
      %p43 = scmp.ne.s32.totalorder %s29, %s30
      %p44 = scmp.eq.s32.totalorder %s22, 1
      %p45 = por %p43, %p44
      %p47 = scmp.ne.s32.totalorder %s30, %s46
      %p48 = scmp.eq.s32.totalorder %s22, 0
      %p49 = por %p47, %p48
      %s51 = sadd.s32 %s50, 1
      %p54 = scmp.eq.s32.totalorder %s16, 1
      %p55 = scmp.ne.s32.totalorder %s50, %s52
      %p56 = scmp.eq.s32.totalorder %s16, 0
      %p57 = por %p55, %p56
      %p58 = scmp.ne.s32.totalorder %s50, %s52
      %p59 = scmp.eq.s32.totalorder %s21, 1
      %p60 = por %p58, %p59
      %p61 = scmp.ne.s32.totalorder %s52, %s53
      %p62 = scmp.eq.s32.totalorder %s21, 0
      %p63 = por %p61, %p62
      %p64 = scmp.ne.s32.totalorder %s52, %s53
      %p65 = scmp.eq.s32.totalorder %s22, 1
      %p66 = por %p64, %p65
      %p68 = scmp.ne.s32.totalorder %s53, %s67
      %p69 = scmp.eq.s32.totalorder %s22, 0
      %p70 = por %p68, %p69
      %s72 = sadd.s32 %s71, 1
      %p75 = scmp.eq.s32.totalorder %s16, 1
      %p76 = scmp.ne.s32.totalorder %s71, %s73
      %p77 = scmp.eq.s32.totalorder %s16, 0
      %p78 = por %p76, %p77
      %p79 = scmp.ne.s32.totalorder %s71, %s73
      %p80 = scmp.eq.s32.totalorder %s21, 1
      %p81 = por %p79, %p80
      %p82 = scmp.ne.s32.totalorder %s73, %s74
      %p83 = scmp.eq.s32.totalorder %s21, 0
      %p84 = por %p82, %p83
      %p85 = scmp.ne.s32.totalorder %s73, %s74
      %p86 = scmp.eq.s32.totalorder %s22, 1
      %p87 = por %p85, %p86
      %p89 = scmp.ne.s32.totalorder %s74, %s88
      %p90 = scmp.eq.s32.totalorder %s22, 0
      %p91 = por %p89, %p90
      %s92 = ssub.s32 %s16, %s23
      %p93 = scmp.eq.s32.totalorder %s92, 0
      %s95 = sadd.s32 %s94, 1
      %s96 = scalar_select %p93, %s94, %s95
      %p99 = pneg %p93
      %p100 = scmp.eq.s32.totalorder %s16, 1
      %p101 = por %p99, %p100
      %p102 = scmp.ne.s32.totalorder %s94, %s97
      %p103 = scmp.eq.s32.totalorder %s16, 0
      %p104 = por %p102, %p103
      %p105 = scmp.ne.s32.totalorder %s94, %s97
      %p106 = scmp.eq.s32.totalorder %s21, 1
      %p107 = por %p105, %p106
      %p108 = scmp.ne.s32.totalorder %s97, %s98
      %p109 = scmp.eq.s32.totalorder %s21, 0
      %p110 = por %p108, %p109
      %p111 = scmp.ne.s32.totalorder %s97, %s98
      %p112 = scmp.eq.s32.totalorder %s22, 1
      %p113 = por %p111, %p112
      %p115 = scmp.ne.s32.totalorder %s98, %s114
      %p116 = scmp.eq.s32.totalorder %s22, 0
      %p117 = por %p115, %p116
      %p118 = scmp.le.s32.totalorder 1, %s16
      %p119 = scmp.lt.s32.totalorder %s16, 3
      %p120 = pnand %p118, %p119
      %p121 = pneg %p120
      // Predicated region
      $region9: #{residual_block.5} parent=5 // pred_check
        _
      $region10: #{residual_block.5} parent=5 // pred_check_branch
        %123 = sbr.rel (%p120) target = $region12
      $region11: #{residual_block.5} parent=5 // pred_region
        %s124 = ssub.s32 %s16, 1
        // Predicated region
        $region13: #{residual_block.5} parent=11 // pred_check
          %p125 = pneg %p63
        $region14: #{residual_block.5} parent=11 // pred_check_branch
          %127 = sbr.rel (%p125) target = $region16
        $region15: #{residual_block.5} parent=11 // pred_region
          %s129 = ssub.s32 16, 16
          %130 = vsyncadd [#allocation6], %s129
          %s132 = sshll.u32 [#allocation5], 4
          %s133 = int_to_ptr.vmem [resolvable:$true] %s132
          %135 = dma.hbm_to_vmem [thread:$0]  %s1, 16, %s133, [#allocation6]
        $region16: #{residual_block.5} parent=11 // pred_fallthru
          _
        // Predicated region
        $region17: #{residual_block.5} parent=11 // pred_check
          %p136 = pneg %p84
        $region18: #{residual_block.5} parent=11 // pred_check_branch
          %138 = sbr.rel (%p136) target = $region20
        $region19: #{residual_block.5} parent=11 // pred_region
          %s140 = ssub.s32 16, 16
          %141 = vsyncadd [#allocation6], %s140
          %s143 = sshll.u32 [#allocation7], 4
          %s144 = int_to_ptr.vmem [resolvable:$true] %s143
          %146 = dma.hbm_to_vmem [thread:$0]  %s2, 16, %s144, [#allocation6]
        $region20: #{residual_block.5} parent=11 // pred_fallthru
          _
      $region12: #{residual_block.5} parent=5 // pred_fallthru
        _
      %p147 = scmp.lt.s32.totalorder %s16, 2
      // Predicated region
      $region21: #{residual_block.5} parent=5 // pred_check
        %p148 = pneg %p147
      $region22: #{residual_block.5} parent=5 // pred_check_branch
        %150 = sbr.rel (%p148) target = $region24
      $region23: #{residual_block.5} parent=5 // pred_region
        // Predicated region
        $region25: #{residual_block.5} parent=23 // pred_check
          %p151 = pneg %p36
        $region26: #{residual_block.5} parent=23 // pred_check_branch
          %153 = sbr.rel (%p151) target = $region28
        $region27: #{residual_block.5} parent=23 // pred_region
          %s154 = sand.u32 %s26, 1
          %s155 = scalar_lea.sflag [#allocation3], %s154
          %s156 = sand.u32 %s26, 1
          %s157 = smul.addr %s156, 256
          %s158 = scalar_lea.vmem [#allocation2], %s157
          %s159 = smul.u32 32, %s16
          %s161 = ssub.s32 4096, 4096
          %162 = vsyncadd %s155, %s161
          %s163 = smul.addr %s159, 128
          %s164 = scalar_lea.hbm %s0, %s163
          %s165 = sshll.u32 %s158, 4
          %s166 = int_to_ptr.vmem [resolvable:$true] %s165
          %171 = dma.hbm_to_vmem [thread:$0]  %s164, 4096, %s166, %s155, 128, 128, 8
        $region28: #{residual_block.5} parent=23 // pred_fallthru
          _
      $region24: #{residual_block.5} parent=5 // pred_fallthru
        _
      %p172 = scmp.le.s32.totalorder 1, %s16
      %p173 = scmp.lt.s32.totalorder %s16, 3
      %p174 = pnand %p172, %p173
      %p175 = pneg %p174
      // Predicated region
      $region29: #{residual_block.5} parent=5 // pred_check
        _
      $region30: #{residual_block.5} parent=5 // pred_check_branch
        %177 = sbr.rel (%p174) target = $region32
      $region31: #{residual_block.5} parent=5 // pred_region
        %s178 = ssub.s32 %s16, 1
        %s179 = sand.u32 %s29, 1
        %s180 = scalar_lea.sflag [#allocation3], %s179
        %s181 = sand.u32 %s29, 1
        %s182 = smul.addr %s181, 256
        %s183 = scalar_lea.vmem [#allocation2], %s182
        // Predicated region
        $region33: #{residual_block.5} parent=31 // pred_check
          %p184 = pneg %p42
        $region34: #{residual_block.5} parent=31 // pred_check_branch
          %186 = sbr.rel (%p184) target = $region36
        $region35: #{residual_block.5} parent=31 // pred_region
          %187 = dma.done %s180, 4096
        $region36: #{residual_block.5} parent=31 // pred_fallthru
          _
        // Predicated region
        $region37: #{residual_block.5} parent=31 // pred_check
          %p188 = pneg %p63
        $region38: #{residual_block.5} parent=31 // pred_check_branch
          %190 = sbr.rel (%p188) target = $region40
        $region39: #{residual_block.5} parent=31 // pred_region
          %191 = dma.done [#allocation6], 16
        $region40: #{residual_block.5} parent=31 // pred_fallthru
          _
        // Predicated region
        $region41: #{residual_block.5} parent=31 // pred_check
          %p192 = pneg %p84
        $region42: #{residual_block.5} parent=31 // pred_check_branch
          %194 = sbr.rel (%p192) target = $region44
        $region43: #{residual_block.5} parent=31 // pred_region
          %195 = dma.done [#allocation6], 16
        $region44: #{residual_block.5} parent=31 // pred_fallthru
          _
        %s196 = sand.u32 %s29, 1
        %s197 = scalar_lea.sflag [#allocation3], %s196
        %s198 = sand.u32 %s29, 1
        %s199 = smul.addr %s198, 256
        %s200 = scalar_lea.vmem [#allocation2], %s199
        %p201 = pneg %p42
        %p202 = pneg %p39
        %p203 = pneg %p63
        %p204 = pneg %p60
        %p205 = pneg %p84
        %p206 = pneg %p81
        %p207 = pneg %p110
        %p208 = pneg %p107
        %s209 = sand.u32 %s97, 1
        %s210 = scalar_lea.sflag [#allocation4], %s209
        %s211 = sand.u32 %s97, 1
        %s212 = smul.addr %s211, 256
        %s213 = scalar_lea.vmem [#allocation8], %s212
        %s214 = smul.u32 32, %s21
        %s215 = smul.u32 32, %s21
        %v216 = vld [vmem:[%s183] sm:$0xff]
        %v217 = vld [vmem:[%s183 + $0x8] sm:$0xff]
        %v218 = vld [vmem:[%s183 + $0x10] sm:$0xff]
        %v219 = vld [vmem:[%s183 + $0x18] sm:$0xff]
        %v220 = vld [vmem:[%s183 + $0x20] sm:$0xff]
        %v221 = vld [vmem:[%s183 + $0x28] sm:$0xff]
        %v222 = vld [vmem:[%s183 + $0x30] sm:$0xff]
        %v223 = vld [vmem:[%s183 + $0x38] sm:$0xff]
        %v224 = vld [vmem:[%s183 + $0x40] sm:$0xff]
        %v225 = vld [vmem:[%s183 + $0x48] sm:$0xff]
        %v226 = vld [vmem:[%s183 + $0x50] sm:$0xff]
        %v227 = vld [vmem:[%s183 + $0x58] sm:$0xff]
        %v228 = vld [vmem:[%s183 + $0x60] sm:$0xff]
        %v229 = vld [vmem:[%s183 + $0x68] sm:$0xff]
        %v230 = vld [vmem:[%s183 + $0x70] sm:$0xff]
        %v231 = vld [vmem:[%s183 + $0x78] sm:$0xff]
        %v232 = vld [vmem:[%s183 + $0x80] sm:$0xff]
        %v233 = vld [vmem:[%s183 + $0x88] sm:$0xff]
        %v234 = vld [vmem:[%s183 + $0x90] sm:$0xff]
        %v235 = vld [vmem:[%s183 + $0x98] sm:$0xff]
        %v236 = vld [vmem:[%s183 + $0xa0] sm:$0xff]
        %v237 = vld [vmem:[%s183 + $0xa8] sm:$0xff]
        %v238 = vld [vmem:[%s183 + $0xb0] sm:$0xff]
        %v239 = vld [vmem:[%s183 + $0xb8] sm:$0xff]
        %v240 = vld [vmem:[%s183 + $0xc0] sm:$0xff]
        %v241 = vld [vmem:[%s183 + $0xc8] sm:$0xff]
        %v242 = vld [vmem:[%s183 + $0xd0] sm:$0xff]
        %v243 = vld [vmem:[%s183 + $0xd8] sm:$0xff]
        %v244 = vld [vmem:[%s183 + $0xe0] sm:$0xff]
        %v245 = vld [vmem:[%s183 + $0xe8] sm:$0xff]
        %v246 = vld [vmem:[%s183 + $0xf0] sm:$0xff]
        %v247 = vld [vmem:[%s183 + $0xf8] sm:$0xff]
        %v248 = vld [vmem:[#allocation5] sm:$0x1]
        %v250 = vlaneseq
        %v251 = vshrl.u32 %v250, 7
        %v252 = vsub.s32 0, %v251
        %v253 = vrot.slane %v248, %v252
        %v255 = vmul.f32 %v216, %v253
        %v256 = vmul.f32 %v217, %v253
        %v257 = vmul.f32 %v218, %v253
        %v258 = vmul.f32 %v219, %v253
        %v259 = vmul.f32 %v220, %v253
        %v260 = vmul.f32 %v221, %v253
        %v261 = vmul.f32 %v222, %v253
        %v262 = vmul.f32 %v223, %v253
        %v263 = vmul.f32 %v224, %v253
        %v264 = vmul.f32 %v225, %v253
        %v265 = vmul.f32 %v226, %v253
        %v266 = vmul.f32 %v227, %v253
        %v267 = vmul.f32 %v228, %v253
        %v268 = vmul.f32 %v229, %v253
        %v269 = vmul.f32 %v230, %v253
        %v270 = vmul.f32 %v231, %v253
        %v271 = vmul.f32 %v232, %v253
        %v272 = vmul.f32 %v233, %v253
        %v273 = vmul.f32 %v234, %v253
        %v274 = vmul.f32 %v235, %v253
        %v275 = vmul.f32 %v236, %v253
        %v276 = vmul.f32 %v237, %v253
        %v277 = vmul.f32 %v238, %v253
        %v278 = vmul.f32 %v239, %v253
        %v279 = vmul.f32 %v240, %v253
        %v280 = vmul.f32 %v241, %v253
        %v281 = vmul.f32 %v242, %v253
        %v282 = vmul.f32 %v243, %v253
        %v283 = vmul.f32 %v244, %v253
        %v284 = vmul.f32 %v245, %v253
        %v285 = vmul.f32 %v246, %v253
        %v286 = vmul.f32 %v247, %v253
        %v287 = vld [vmem:[#allocation7] sm:$0x1]
        %v289 = vlaneseq
        %v290 = vshrl.u32 %v289, 7
        %v291 = vsub.s32 0, %v290
        %v292 = vrot.slane %v287, %v291
        %v294 = vadd.f32 %v255, %v292
        %v295 = vadd.f32 %v256, %v292
        %v296 = vadd.f32 %v257, %v292
        %v297 = vadd.f32 %v258, %v292
        %v298 = vadd.f32 %v259, %v292
        %v299 = vadd.f32 %v260, %v292
        %v300 = vadd.f32 %v261, %v292
        %v301 = vadd.f32 %v262, %v292
        %v302 = vadd.f32 %v263, %v292
        %v303 = vadd.f32 %v264, %v292
        %v304 = vadd.f32 %v265, %v292
        %v305 = vadd.f32 %v266, %v292
        %v306 = vadd.f32 %v267, %v292
        %v307 = vadd.f32 %v268, %v292
        %v308 = vadd.f32 %v269, %v292
        %v309 = vadd.f32 %v270, %v292
        %v310 = vadd.f32 %v271, %v292
        %v311 = vadd.f32 %v272, %v292
        %v312 = vadd.f32 %v273, %v292
        %v313 = vadd.f32 %v274, %v292
        %v314 = vadd.f32 %v275, %v292
        %v315 = vadd.f32 %v276, %v292
        %v316 = vadd.f32 %v277, %v292
        %v317 = vadd.f32 %v278, %v292
        %v318 = vadd.f32 %v279, %v292
        %v319 = vadd.f32 %v280, %v292
        %v320 = vadd.f32 %v281, %v292
        %v321 = vadd.f32 %v282, %v292
        %v322 = vadd.f32 %v283, %v292
        %v323 = vadd.f32 %v284, %v292
        %v324 = vadd.f32 %v285, %v292
        %v325 = vadd.f32 %v286, %v292
        %v326 = vmax.f32 %v294, 0.0
        %v327 = vmax.f32 %v295, 0.0
        %v328 = vmax.f32 %v296, 0.0
        %v329 = vmax.f32 %v297, 0.0
        %v330 = vmax.f32 %v298, 0.0
        %v331 = vmax.f32 %v299, 0.0
        %v332 = vmax.f32 %v300, 0.0
        %v333 = vmax.f32 %v301, 0.0
        %v334 = vmax.f32 %v302, 0.0
        %v335 = vmax.f32 %v303, 0.0
        %v336 = vmax.f32 %v304, 0.0
        %v337 = vmax.f32 %v305, 0.0
        %v338 = vmax.f32 %v306, 0.0
        %v339 = vmax.f32 %v307, 0.0
        %v340 = vmax.f32 %v308, 0.0
        %v341 = vmax.f32 %v309, 0.0
        %v342 = vmax.f32 %v310, 0.0
        %v343 = vmax.f32 %v311, 0.0
        %v344 = vmax.f32 %v312, 0.0
        %v345 = vmax.f32 %v313, 0.0
        %v346 = vmax.f32 %v314, 0.0
        %v347 = vmax.f32 %v315, 0.0
        %v348 = vmax.f32 %v316, 0.0
        %v349 = vmax.f32 %v317, 0.0
        %v350 = vmax.f32 %v318, 0.0
        %v351 = vmax.f32 %v319, 0.0
        %v352 = vmax.f32 %v320, 0.0
        %v353 = vmax.f32 %v321, 0.0
        %v354 = vmax.f32 %v322, 0.0
        %v355 = vmax.f32 %v323, 0.0
        %v356 = vmax.f32 %v324, 0.0
        %v357 = vmax.f32 %v325, 0.0
        %vm358 = vcmask 31744
        %359 = vst.msk [vmem:[%s213] sm:$0xff] %vm358, %v326
        %360 = vst.msk [vmem:[%s213 + $0x8] sm:$0xff] %vm358, %v327
        %361 = vst.msk [vmem:[%s213 + $0x10] sm:$0xff] %vm358, %v328
        %362 = vst.msk [vmem:[%s213 + $0x18] sm:$0xff] %vm358, %v329
        %363 = vst.msk [vmem:[%s213 + $0x20] sm:$0xff] %vm358, %v330
        %364 = vst.msk [vmem:[%s213 + $0x28] sm:$0xff] %vm358, %v331
        %365 = vst.msk [vmem:[%s213 + $0x30] sm:$0xff] %vm358, %v332
        %366 = vst.msk [vmem:[%s213 + $0x38] sm:$0xff] %vm358, %v333
        %367 = vst.msk [vmem:[%s213 + $0x40] sm:$0xff] %vm358, %v334
        %368 = vst.msk [vmem:[%s213 + $0x48] sm:$0xff] %vm358, %v335
        %369 = vst.msk [vmem:[%s213 + $0x50] sm:$0xff] %vm358, %v336
        %370 = vst.msk [vmem:[%s213 + $0x58] sm:$0xff] %vm358, %v337
        %371 = vst.msk [vmem:[%s213 + $0x60] sm:$0xff] %vm358, %v338
        %372 = vst.msk [vmem:[%s213 + $0x68] sm:$0xff] %vm358, %v339
        %373 = vst.msk [vmem:[%s213 + $0x70] sm:$0xff] %vm358, %v340
        %374 = vst.msk [vmem:[%s213 + $0x78] sm:$0xff] %vm358, %v341
        %375 = vst.msk [vmem:[%s213 + $0x80] sm:$0xff] %vm358, %v342
        %376 = vst.msk [vmem:[%s213 + $0x88] sm:$0xff] %vm358, %v343
        %377 = vst.msk [vmem:[%s213 + $0x90] sm:$0xff] %vm358, %v344
        %378 = vst.msk [vmem:[%s213 + $0x98] sm:$0xff] %vm358, %v345
        %379 = vst.msk [vmem:[%s213 + $0xa0] sm:$0xff] %vm358, %v346
        %380 = vst.msk [vmem:[%s213 + $0xa8] sm:$0xff] %vm358, %v347
        %381 = vst.msk [vmem:[%s213 + $0xb0] sm:$0xff] %vm358, %v348
        %382 = vst.msk [vmem:[%s213 + $0xb8] sm:$0xff] %vm358, %v349
        %383 = vst.msk [vmem:[%s213 + $0xc0] sm:$0xff] %vm358, %v350
        %384 = vst.msk [vmem:[%s213 + $0xc8] sm:$0xff] %vm358, %v351
        %385 = vst.msk [vmem:[%s213 + $0xd0] sm:$0xff] %vm358, %v352
        %386 = vst.msk [vmem:[%s213 + $0xd8] sm:$0xff] %vm358, %v353
        %387 = vst.msk [vmem:[%s213 + $0xe0] sm:$0xff] %vm358, %v354
        %388 = vst.msk [vmem:[%s213 + $0xe8] sm:$0xff] %vm358, %v355
        %389 = vst.msk [vmem:[%s213 + $0xf0] sm:$0xff] %vm358, %v356
        %390 = vst.msk [vmem:[%s213 + $0xf8] sm:$0xff] %vm358, %v357
        %s391 = sand.u32 %s97, 1
        %s392 = scalar_lea.sflag [#allocation4], %s391
        %s393 = sand.u32 %s97, 1
        %s394 = smul.addr %s393, 256
        %s395 = scalar_lea.vmem [#allocation8], %s394
        // Predicated region
        $region45: #{residual_block.5} parent=31 // pred_check
          %p396 = pneg %p107
        $region46: #{residual_block.5} parent=31 // pred_check_branch
          %398 = sbr.rel (%p396) target = $region48
        $region47: #{residual_block.5} parent=31 // pred_region
          %s399 = smul.u32 32, %s21
          %s401 = ssub.s32 4096, 4096
          %402 = vsyncadd %s392, %s401
          %s403 = smul.addr %s399, 128
          %s404 = scalar_lea.hbm %s3, %s403
          %s405 = sshll.u32 %s395, 4
          %s406 = int_to_ptr.vmem [resolvable:$true] %s405
          %411 = dma.vmem_to_hbm [thread:$0]  %s406, 4096, %s404, %s392, 128, 128, 8
        $region48: #{residual_block.5} parent=31 // pred_fallthru
          _
      $region32: #{residual_block.5} parent=5 // pred_fallthru
        _
      %p412 = scmp.le.s32.totalorder 2, %s16
      // Predicated region
      $region49: #{residual_block.5} parent=5 // pred_check
        %p413 = pneg %p412
      $region50: #{residual_block.5} parent=5 // pred_check_branch
        %415 = sbr.rel (%p413) target = $region52
      $region51: #{residual_block.5} parent=5 // pred_region
        %s416 = ssub.s32 %s16, 2
        // Predicated region
        $region53: #{residual_block.5} parent=51 // pred_check
          %p417 = pneg %p113
        $region54: #{residual_block.5} parent=51 // pred_check_branch
          %419 = sbr.rel (%p417) target = $region56
        $region55: #{residual_block.5} parent=51 // pred_region
          %s420 = sand.u32 %s98, 1
          %s421 = scalar_lea.sflag [#allocation4], %s420
          %s422 = sand.u32 %s98, 1
          %s423 = smul.addr %s422, 256
          %s424 = scalar_lea.vmem [#allocation8], %s423
          %425 = dma.done %s421, 4096
        $region56: #{residual_block.5} parent=51 // pred_fallthru
          _
      $region52: #{residual_block.5} parent=5 // pred_fallthru
        _
    $region6: #{residual_block.5} parent=1 // loop_footer
      %s20 = sadd.s32 1, %s16
    $region7: #{residual_block.5} parent=1 // loop_footer_branch
      %15 = sbr.rel target = $region3
    $region8: #{residual_block.5} parent=1 // loop_exit
      _
    %426 = vsyncpa [#allocation3], 1
    %s427 = scalar_lea.sflag [#allocation3], 1
    %428 = vsyncpa %s427, 1
    %429 = vsyncpa [#allocation6], 1
    %430 = vsyncpa [#allocation4], 1
    %s431 = scalar_lea.sflag [#allocation4], 1
    %432 = vsyncpa %s431, 1

// kernel: residual_block.4
$region0: #{residual_block.4}
  #allocation0 [shape = 'u32[]', space=smem, size = 0x4, offset = 0x4, fixed_abs, tag = 'smem constant byte address 0x4 - core index']
  #allocation1 [shape = 'u32[144,128]{1,0:T(1,128)}', space=vmem, size = 0x12000, scoped, tag = 'internal scratch']
  %s0 = inlined_call_operand.hbm [shape: f32[512,36], index: 0, kind: input, shape index: {}]
  %s1 = inlined_call_operand.hbm [shape: f32[36,4], index: 1, kind: input, shape index: {}]
  %s2 = inlined_call_operand.hbm [shape: f32[512,4], index: 2, kind: output, shape index: {0}]
  %s3 = inlined_call_operand.hbm [shape: f32[2,2,4], index: 3, kind: output, shape index: {1}]
  %4 = xla_tuple %s2, %s3
  %s5 = sld [smem:[#allocation0]]
  $region57: #{residual_block.4} parent=0
    _
  %s7 = ssub.s32 1, %s5
  %s8 = scalar_select 0, %s7, %s5
  $region1: #{residual_block.4} parent=0
    #allocation2 [shape = 'u8[262144]{0}', space=vmem, size = 0x40000, scoped, tag = 'input window, operand 0']
    #allocation3 [shape = 's32[2]{0}', space=sflag, size = 0x8, scoped, tag = 'scoped memory for residual_block.4']
    #allocation4 [shape = 's32[2]{0}', space=sflag, size = 0x8, scoped, tag = 'scoped memory for residual_block.4']
    #allocation5 [shape = 'u8[20480]{0}', space=vmem, size = 0x5000, scoped, tag = 'input window, operand 1, single buffered']
    #allocation6 [shape = 's32[1]{0}', space=sflag, size = 0x4, scoped, tag = 'scoped memory for residual_block.4']
    #allocation7 [shape = 'u8[262144]{0}', space=vmem, size = 0x40000, scoped, tag = 'output window, operand 0']
    #allocation8 [shape = 'u8[2048]{0}', space=vmem, size = 0x800, scoped, tag = 'output window, operand 1']
    #allocation9 [shape = 's32[2]{0}', space=sflag, size = 0x8, scoped, tag = 'scoped memory for residual_block.4']
    %9 = vsyncpa [#allocation3], 0
    %s10 = scalar_lea.sflag [#allocation3], 1
    %11 = vsyncpa %s10, 0
    %12 = vsyncpa [#allocation6], 0
    %13 = vsyncpa [#allocation4], 0
    %s14 = scalar_lea.sflag [#allocation4], 1
    %15 = vsyncpa %s14, 0
    %16 = vsyncpa [#allocation9], 0
    %s17 = scalar_lea.sflag [#allocation9], 1
    %18 = vsyncpa %s17, 0
    loop: start=0, step=1, limit=4
    $region2: #{residual_block.4} parent=1 // loop_pre_header
      _
    $region3: #{residual_block.4} parent=1 // loop_header
      %s20 = sphi 0, %s24
      %p21 = scmp.ge.s32.totalorder %s20, 4
      %s30 = sphi 0, %s32
      %s33 = sphi 0, %s30
      %s34 = sphi 0, %s33
      %s50 = sphi 0, %s34
      %s54 = sphi 0, %s54
      %s56 = sphi 0, %s54
      %s57 = sphi 0, %s56
      %s71 = sphi 0, %s57
      %s77 = sphi 0, %s79
      %s80 = sphi 0, %s77
      %s81 = sphi 0, %s80
      %s97 = sphi 0, %s81
      %s103 = sphi 0, %s105
      %s106 = sphi 0, %s103
      %s107 = sphi 0, %s106
      %s123 = sphi 0, %s107
    $region4: #{residual_block.4} parent=1 // loop_header_branch
      %23 = sbr.rel (%p21) target = $region8
    $region5: #{residual_block.4} parent=1 // loop_body
      %s25 = ssub.s32 %s20, 1
      %s26 = ssub.s32 %s20, 2
      %s27 = sadd.s32 %s20, 1
      %s28 = ssub.s32 %s20, %s27
      %p29 = scmp.eq.s32.totalorder %s28, 0
      %s31 = sadd.s32 %s30, 1
      %s32 = scalar_select %p29, %s30, %s31
      %p35 = pneg %p29
      %p36 = scmp.eq.s32.totalorder %s20, 1
      %p37 = por %p35, %p36
      %p38 = scmp.ne.s32.totalorder %s30, %s33
      %p39 = scmp.eq.s32.totalorder %s20, 0
      %p40 = por %p38, %p39
      %p41 = scmp.ne.s32.totalorder %s30, %s33
      %p42 = scmp.eq.s32.totalorder %s25, 1
      %p43 = por %p41, %p42
      %p44 = scmp.ne.s32.totalorder %s33, %s34
      %p45 = scmp.eq.s32.totalorder %s25, 0
      %p46 = por %p44, %p45
      %p47 = scmp.ne.s32.totalorder %s33, %s34
      %p48 = scmp.eq.s32.totalorder %s26, 1
      %p49 = por %p47, %p48
      %p51 = scmp.ne.s32.totalorder %s34, %s50
      %p52 = scmp.eq.s32.totalorder %s26, 0
      %p53 = por %p51, %p52
      %s55 = sadd.s32 %s54, 1
      %p58 = scmp.eq.s32.totalorder %s20, 1
      %p59 = scmp.ne.s32.totalorder %s54, %s56
      %p60 = scmp.eq.s32.totalorder %s20, 0
      %p61 = por %p59, %p60
      %p62 = scmp.ne.s32.totalorder %s54, %s56
      %p63 = scmp.eq.s32.totalorder %s25, 1
      %p64 = por %p62, %p63
      %p65 = scmp.ne.s32.totalorder %s56, %s57
      %p66 = scmp.eq.s32.totalorder %s25, 0
      %p67 = por %p65, %p66
      %p68 = scmp.ne.s32.totalorder %s56, %s57
      %p69 = scmp.eq.s32.totalorder %s26, 1
      %p70 = por %p68, %p69
      %p72 = scmp.ne.s32.totalorder %s57, %s71
      %p73 = scmp.eq.s32.totalorder %s26, 0
      %p74 = por %p72, %p73
      %s75 = ssub.s32 %s20, %s27
      %p76 = scmp.eq.s32.totalorder %s75, 0
      %s78 = sadd.s32 %s77, 1
      %s79 = scalar_select %p76, %s77, %s78
      %p82 = pneg %p76
      %p83 = scmp.eq.s32.totalorder %s20, 1
      %p84 = por %p82, %p83
      %p85 = scmp.ne.s32.totalorder %s77, %s80
      %p86 = scmp.eq.s32.totalorder %s20, 0
      %p87 = por %p85, %p86
      %p88 = scmp.ne.s32.totalorder %s77, %s80
      %p89 = scmp.eq.s32.totalorder %s25, 1
      %p90 = por %p88, %p89
      %p91 = scmp.ne.s32.totalorder %s80, %s81
      %p92 = scmp.eq.s32.totalorder %s25, 0
      %p93 = por %p91, %p92
      %p94 = scmp.ne.s32.totalorder %s80, %s81
      %p95 = scmp.eq.s32.totalorder %s26, 1
      %p96 = por %p94, %p95
      %p98 = scmp.ne.s32.totalorder %s81, %s97
      %p99 = scmp.eq.s32.totalorder %s26, 0
      %p100 = por %p98, %p99
      %s101 = ssub.s32 %s20, %s27
      %p102 = scmp.eq.s32.totalorder %s101, 0
      %s104 = sadd.s32 %s103, 1
      %s105 = scalar_select %p102, %s103, %s104
      %p108 = pneg %p102
      %p109 = scmp.eq.s32.totalorder %s20, 1
      %p110 = por %p108, %p109
      %p111 = scmp.ne.s32.totalorder %s103, %s106
      %p112 = scmp.eq.s32.totalorder %s20, 0
      %p113 = por %p111, %p112
      %p114 = scmp.ne.s32.totalorder %s103, %s106
      %p115 = scmp.eq.s32.totalorder %s25, 1
      %p116 = por %p114, %p115
      %p117 = scmp.ne.s32.totalorder %s106, %s107
      %p118 = scmp.eq.s32.totalorder %s25, 0
      %p119 = por %p117, %p118
      %p120 = scmp.ne.s32.totalorder %s106, %s107
      %p121 = scmp.eq.s32.totalorder %s26, 1
      %p122 = por %p120, %p121
      %p124 = scmp.ne.s32.totalorder %s107, %s123
      %p125 = scmp.eq.s32.totalorder %s26, 0
      %p126 = por %p124, %p125
      %p127 = scmp.le.s32.totalorder 1, %s20
      %p128 = scmp.lt.s32.totalorder %s20, 3
      %p129 = pnand %p127, %p128
      %p130 = pneg %p129
      // Predicated region
      $region9: #{residual_block.4} parent=5 // pred_check
        _
      $region10: #{residual_block.4} parent=5 // pred_check_branch
        %132 = sbr.rel (%p129) target = $region12
      $region11: #{residual_block.4} parent=5 // pred_region
        %s133 = ssub.s32 %s20, 1
        // Predicated region
        $region13: #{residual_block.4} parent=11 // pred_check
          %p134 = pneg %p67
        $region14: #{residual_block.4} parent=11 // pred_check_branch
          %136 = sbr.rel (%p134) target = $region16
        $region15: #{residual_block.4} parent=11 // pred_region
          %s138 = ssub.s32 640, 640
          %139 = vsyncadd [#allocation6], %s138
          %s140 = sshll.u32 [#allocation5], 4
          %s141 = int_to_ptr.vmem [resolvable:$true] %s140
          %146 = dma.hbm_to_vmem [thread:$0]  %s1, 640, %s141, [#allocation6], 128, 128, 8
        $region16: #{residual_block.4} parent=11 // pred_fallthru
          _
      $region12: #{residual_block.4} parent=5 // pred_fallthru
        _
      %p147 = scmp.lt.s32.totalorder %s20, 2
      // Predicated region
      $region17: #{residual_block.4} parent=5 // pred_check
        %p148 = pneg %p147
      $region18: #{residual_block.4} parent=5 // pred_check_branch
        %150 = sbr.rel (%p148) target = $region20
      $region19: #{residual_block.4} parent=5 // pred_region
        // Predicated region
        $region21: #{residual_block.4} parent=19 // pred_check
          %p151 = pneg %p40
        $region22: #{residual_block.4} parent=19 // pred_check_branch
          %153 = sbr.rel (%p151) target = $region24
        $region23: #{residual_block.4} parent=19 // pred_region
          %s154 = sand.u32 %s30, 1
          %s155 = scalar_lea.sflag [#allocation3], %s154
          %s156 = sand.u32 %s30, 1
          %s157 = smul.addr %s156, 256
          %s158 = scalar_lea.vmem [#allocation2], %s157
          %s159 = smul.u32 32, %s20
          %s161 = ssub.s32 4096, 4096
          %162 = vsyncadd %s155, %s161
          %s163 = smul.addr %s159, 128
          %s164 = scalar_lea.hbm %s0, %s163
          %s165 = sshll.u32 %s158, 4
          %s166 = int_to_ptr.vmem [resolvable:$true] %s165
          %171 = dma.hbm_to_vmem [thread:$0]  %s164, 4096, %s166, %s155, 128, 128, 8
        $region24: #{residual_block.4} parent=19 // pred_fallthru
          _
      $region20: #{residual_block.4} parent=5 // pred_fallthru
        _
      %p172 = scmp.le.s32.totalorder 1, %s20
      %p173 = scmp.lt.s32.totalorder %s20, 3
      %p174 = pnand %p172, %p173
      %p175 = pneg %p174
      // Predicated region
      $region25: #{residual_block.4} parent=5 // pred_check
        _
      $region26: #{residual_block.4} parent=5 // pred_check_branch
        %177 = sbr.rel (%p174) target = $region28
      $region27: #{residual_block.4} parent=5 // pred_region
        %s178 = ssub.s32 %s20, 1
        %s179 = sand.u32 %s33, 1
        %s180 = scalar_lea.sflag [#allocation3], %s179
        %s181 = sand.u32 %s33, 1
        %s182 = smul.addr %s181, 256
        %s183 = scalar_lea.vmem [#allocation2], %s182
        // Predicated region
        $region29: #{residual_block.4} parent=27 // pred_check
          %p184 = pneg %p46
        $region30: #{residual_block.4} parent=27 // pred_check_branch
          %186 = sbr.rel (%p184) target = $region32
        $region31: #{residual_block.4} parent=27 // pred_region
          %187 = dma.done %s180, 4096
        $region32: #{residual_block.4} parent=27 // pred_fallthru
          _
        // Predicated region
        $region33: #{residual_block.4} parent=27 // pred_check
          %p188 = pneg %p67
        $region34: #{residual_block.4} parent=27 // pred_check_branch
          %190 = sbr.rel (%p188) target = $region36
        $region35: #{residual_block.4} parent=27 // pred_region
          %191 = dma.done [#allocation6], 640
        $region36: #{residual_block.4} parent=27 // pred_fallthru
          _
        %s192 = sand.u32 %s33, 1
        %s193 = scalar_lea.sflag [#allocation3], %s192
        %s194 = sand.u32 %s33, 1
        %s195 = smul.addr %s194, 256
        %s196 = scalar_lea.vmem [#allocation2], %s195
        %p197 = pneg %p46
        %p198 = pneg %p43
        %p199 = pneg %p67
        %p200 = pneg %p64
        %p201 = pneg %p93
        %p202 = pneg %p90
        %s203 = sand.u32 %s80, 1
        %s204 = scalar_lea.sflag [#allocation4], %s203
        %s205 = sand.u32 %s80, 1
        %s206 = smul.addr %s205, 256
        %s207 = scalar_lea.vmem [#allocation7], %s206
        %p208 = pneg %p119
        %p209 = pneg %p116
        %s210 = sand.u32 %s106, 1
        %s211 = scalar_lea.sflag [#allocation9], %s210
        %s212 = sand.u32 %s106, 1
        %s213 = smul.addr %s212, 2
        %s214 = scalar_lea.vmem [#allocation8], %s213
        %s215 = smul.u32 32, %s25
        %s216 = smul.u32 32, %s25
        %v217 = vld [vmem:[%s183] sm:$0xff]
        %v218 = vld [vmem:[%s183 + $0x8] sm:$0xff]
        %v219 = vld [vmem:[%s183 + $0x10] sm:$0xff]
        %v220 = vld [vmem:[%s183 + $0x18] sm:$0xff]
        %v221 = vld [vmem:[%s183 + $0x20] sm:$0xff]
        %v222 = vld [vmem:[%s183 + $0x28] sm:$0xff]
        %v223 = vld [vmem:[%s183 + $0x30] sm:$0xff]
        %v224 = vld [vmem:[%s183 + $0x38] sm:$0xff]
        %v225 = vld [vmem:[%s183 + $0x40] sm:$0xff]
        %v226 = vld [vmem:[%s183 + $0x48] sm:$0xff]
        %v227 = vld [vmem:[%s183 + $0x50] sm:$0xff]
        %v228 = vld [vmem:[%s183 + $0x58] sm:$0xff]
        %v229 = vld [vmem:[%s183 + $0x60] sm:$0xff]
        %v230 = vld [vmem:[%s183 + $0x68] sm:$0xff]
        %v231 = vld [vmem:[%s183 + $0x70] sm:$0xff]
        %v232 = vld [vmem:[%s183 + $0x78] sm:$0xff]
        %v233 = vld [vmem:[%s183 + $0x80] sm:$0xff]
        %v234 = vld [vmem:[%s183 + $0x88] sm:$0xff]
        %v235 = vld [vmem:[%s183 + $0x90] sm:$0xff]
        %v236 = vld [vmem:[%s183 + $0x98] sm:$0xff]
        %v237 = vld [vmem:[%s183 + $0xa0] sm:$0xff]
        %v238 = vld [vmem:[%s183 + $0xa8] sm:$0xff]
        %v239 = vld [vmem:[%s183 + $0xb0] sm:$0xff]
        %v240 = vld [vmem:[%s183 + $0xb8] sm:$0xff]
        %v241 = vld [vmem:[%s183 + $0xc0] sm:$0xff]
        %v242 = vld [vmem:[%s183 + $0xc8] sm:$0xff]
        %v243 = vld [vmem:[%s183 + $0xd0] sm:$0xff]
        %v244 = vld [vmem:[%s183 + $0xd8] sm:$0xff]
        %v245 = vld [vmem:[%s183 + $0xe0] sm:$0xff]
        %v246 = vld [vmem:[%s183 + $0xe8] sm:$0xff]
        %v247 = vld [vmem:[%s183 + $0xf0] sm:$0xff]
        %v248 = vld [vmem:[%s183 + $0xf8] sm:$0xff]
        %v249 = vld [vmem:[#allocation5] sm:$0xff]
        %v250 = vld [vmem:[#allocation5 + $0x8] sm:$0xff]
        %v251 = vld [vmem:[#allocation5 + $0x10] sm:$0xff]
        %v252 = vld [vmem:[#allocation5 + $0x18] sm:$0xff]
        %v253 = vld [vmem:[#allocation5 + $0x20] sm:$0xf]
        %vm254 = vcmask 293888
        %v256 = vsel %vm254, %v217, 0
        %v259 = vsel %vm254, %v218, 0
        %v262 = vsel %vm254, %v219, 0
        %v265 = vsel %vm254, %v220, 0
        %v268 = vsel %vm254, %v221, 0
        %v271 = vsel %vm254, %v222, 0
        %v274 = vsel %vm254, %v223, 0
        %v277 = vsel %vm254, %v224, 0
        %v280 = vsel %vm254, %v225, 0
        %v283 = vsel %vm254, %v226, 0
        %v286 = vsel %vm254, %v227, 0
        %v289 = vsel %vm254, %v228, 0
        %v292 = vsel %vm254, %v229, 0
        %v295 = vsel %vm254, %v230, 0
        %v298 = vsel %vm254, %v231, 0
        %v301 = vsel %vm254, %v232, 0
        %v304 = vsel %vm254, %v233, 0
        %v307 = vsel %vm254, %v234, 0
        %v310 = vsel %vm254, %v235, 0
        %v313 = vsel %vm254, %v236, 0
        %v316 = vsel %vm254, %v237, 0
        %v319 = vsel %vm254, %v238, 0
        %v322 = vsel %vm254, %v239, 0
        %v325 = vsel %vm254, %v240, 0
        %v328 = vsel %vm254, %v241, 0
        %v331 = vsel %vm254, %v242, 0
        %v334 = vsel %vm254, %v243, 0
        %v337 = vsel %vm254, %v244, 0
        %v340 = vsel %vm254, %v245, 0
        %v343 = vsel %vm254, %v246, 0
        %v346 = vsel %vm254, %v247, 0
        %v349 = vsel %vm254, %v248, 0
        %vm351 = vcmask 1043456
        %v353 = vsel %vm351, %v253, 0
        %355 = vmatprep.subr.mxu0 0.0
        %356 = vmatpush1.msra.mxu0 %v249
        %357 = vmatprep.subr.mxu0 0.0
        %358 = vmatpush1.msra.mxu0 %v250
        %359 = vmatprep.subr.mxu0 0.0
        %360 = vmatpush1.msra.mxu0 %v251
        %361 = vmatprep.subr.mxu0 0.0
        %362 = vmatpush1.msra.mxu0 %v252
        %363 = vmatprep.subr.mxu0 0.0
        %364 = vmatpush1.msra.mxu0 %v353
        %365 = vmatprep.subr.mxu0 0.0
        %366 = vmatpush1.msra.mxu0 0.0
        %367 = vmatprep.subr.mxu0 0.0
        %368 = vmatpush1.msra.mxu0 0.0
        %369 = vmatprep.subr.mxu0 0.0
        %370 = vmatpush1.msra.mxu0 0.0
        %371 = vmatprep.subr.mxu0 0.0
        %372 = vmatpush1.msra.mxu0 0.0
        %373 = vmatprep.subr.mxu0 0.0
        %374 = vmatpush1.msra.mxu0 0.0
        %375 = vmatprep.subr.mxu0 0.0
        %376 = vmatpush1.msra.mxu0 0.0
        %377 = vmatprep.subr.mxu0 0.0
        %378 = vmatpush1.msra.mxu0 0.0
        %379 = vmatprep.subr.mxu0 0.0
        %380 = vmatpush1.msra.mxu0 0.0
        %381 = vmatprep.subr.mxu0 0.0
        %382 = vmatpush1.msra.mxu0 0.0
        %383 = vmatprep.subr.mxu0 0.0
        %384 = vmatpush1.msra.mxu0 0.0
        %385 = vmatprep.subr.mxu0 0.0
        %386 = vmatpush1.msra.mxu0 0.0
        %387 = vmatprep.subr.mxu0 0.0
        %388 = vmatpush1.msra.mxu0 0.0
        %389 = vmatprep.subr.mxu0 0.0
        %390 = vmatpush1.msra.mxu0 0.0
        %391 = vmatprep.subr.mxu0 0.0
        %392 = vmatpush1.msra.mxu0 0.0
        %393 = vmatprep.subr.mxu0 0.0
        %394 = vmatpush1.msra.mxu0 0.0
        %395 = vmatprep.subr.mxu0 0.0
        %396 = vmatpush1.msra.mxu0 0.0
        %397 = vmatprep.subr.mxu0 0.0
        %398 = vmatpush1.msra.mxu0 0.0
        %399 = vmatprep.subr.mxu0 0.0
        %400 = vmatpush1.msra.mxu0 0.0
        %401 = vmatprep.subr.mxu0 0.0
        %402 = vmatpush1.msra.mxu0 0.0
        %403 = vmatprep.subr.mxu0 0.0
        %404 = vmatpush1.msra.mxu0 0.0
        %405 = vmatprep.subr.mxu0 0.0
        %406 = vmatpush1.msra.mxu0 0.0
        %407 = vmatprep.subr.mxu0 0.0
        %408 = vmatpush1.msra.mxu0 0.0
        %409 = vmatprep.subr.mxu0 0.0
        %410 = vmatpush1.msra.mxu0 0.0
        %411 = vmatprep.subr.mxu0 0.0
        %412 = vmatpush1.msra.mxu0 0.0
        %413 = vmatprep.subr.mxu0 0.0
        %414 = vmatpush1.msra.mxu0 0.0
        %415 = vmatprep.subr.mxu0 0.0
        %416 = vmatpush1.msra.mxu0 0.0
        %417 = vmatprep.subr.mxu0 0.0
        %418 = vmatpush1.msra.mxu0 0.0
        %419 = vmatprep.mubr.f32.mxu0 0.0
        %420 = vmatmul.mubr.f32.gmra.mrb[0].mxu0 %v256
        %v421 = vpop.f32.mrb[0].mxu0
        %v422 = vadd.f32 0.0, %v421
        %v423 = vpop.f32.mrb[0].mxu0
        %424 = vmatprep.mubr.f32.mxu0 0.0
        %425 = vmatmul.mubr.f32.gmra.mrb[0].mxu0 %v259
        %v426 = vpop.f32.mrb[0].mxu0
        %v427 = vadd.f32 0.0, %v426
        %v428 = vpop.f32.mrb[0].mxu0
        %429 = vmatprep.mubr.f32.mxu0 0.0
        %430 = vmatmul.mubr.f32.gmra.mrb[0].mxu0 %v262
        %v431 = vpop.f32.mrb[0].mxu0
        %v432 = vadd.f32 0.0, %v431
        %v433 = vpop.f32.mrb[0].mxu0
        %434 = vmatprep.mubr.f32.mxu0 0.0
        %435 = vmatmul.mubr.f32.gmra.mrb[0].mxu0 %v265
        %v436 = vpop.f32.mrb[0].mxu0
        %v437 = vadd.f32 0.0, %v436
        %v438 = vpop.f32.mrb[0].mxu0
        %439 = vmatprep.mubr.f32.mxu0 0.0
        %440 = vmatmul.mubr.f32.gmra.mrb[0].mxu0 %v268
        %v441 = vpop.f32.mrb[0].mxu0
        %v442 = vadd.f32 0.0, %v441
        %v443 = vpop.f32.mrb[0].mxu0
        %444 = vmatprep.mubr.f32.mxu0 0.0
        %445 = vmatmul.mubr.f32.gmra.mrb[0].mxu0 %v271
        %v446 = vpop.f32.mrb[0].mxu0
        %v447 = vadd.f32 0.0, %v446
        %v448 = vpop.f32.mrb[0].mxu0
        %449 = vmatprep.mubr.f32.mxu0 0.0
        %450 = vmatmul.mubr.f32.gmra.mrb[0].mxu0 %v274
        %v451 = vpop.f32.mrb[0].mxu0
        %v452 = vadd.f32 0.0, %v451
        %v453 = vpop.f32.mrb[0].mxu0
        %454 = vmatprep.mubr.f32.mxu0 0.0
        %455 = vmatmul.mubr.f32.gmra.mrb[0].mxu0 %v277
        %v456 = vpop.f32.mrb[0].mxu0
        %v457 = vadd.f32 0.0, %v456
        %v458 = vpop.f32.mrb[0].mxu0
        %459 = vmatprep.mubr.f32.mxu0 0.0
        %460 = vmatmul.mubr.f32.gmra.mrb[0].mxu0 %v280
        %v461 = vpop.f32.mrb[0].mxu0
        %v462 = vadd.f32 0.0, %v461
        %v463 = vpop.f32.mrb[0].mxu0
        %464 = vmatprep.mubr.f32.mxu0 0.0
        %465 = vmatmul.mubr.f32.gmra.mrb[0].mxu0 %v283
        %v466 = vpop.f32.mrb[0].mxu0
        %v467 = vadd.f32 0.0, %v466
        %v468 = vpop.f32.mrb[0].mxu0
        %469 = vmatprep.mubr.f32.mxu0 0.0
        %470 = vmatmul.mubr.f32.gmra.mrb[0].mxu0 %v286
        %v471 = vpop.f32.mrb[0].mxu0
        %v472 = vadd.f32 0.0, %v471
        %v473 = vpop.f32.mrb[0].mxu0
        %474 = vmatprep.mubr.f32.mxu0 0.0
        %475 = vmatmul.mubr.f32.gmra.mrb[0].mxu0 %v289
        %v476 = vpop.f32.mrb[0].mxu0
        %v477 = vadd.f32 0.0, %v476
        %v478 = vpop.f32.mrb[0].mxu0
        %479 = vmatprep.mubr.f32.mxu0 0.0
        %480 = vmatmul.mubr.f32.gmra.mrb[0].mxu0 %v292
        %v481 = vpop.f32.mrb[0].mxu0
        %v482 = vadd.f32 0.0, %v481
        %v483 = vpop.f32.mrb[0].mxu0
        %484 = vmatprep.mubr.f32.mxu0 0.0
        %485 = vmatmul.mubr.f32.gmra.mrb[0].mxu0 %v295
        %v486 = vpop.f32.mrb[0].mxu0
        %v487 = vadd.f32 0.0, %v486
        %v488 = vpop.f32.mrb[0].mxu0
        %489 = vmatprep.mubr.f32.mxu0 0.0
        %490 = vmatmul.mubr.f32.gmra.mrb[0].mxu0 %v298
        %v491 = vpop.f32.mrb[0].mxu0
        %v492 = vadd.f32 0.0, %v491
        %v493 = vpop.f32.mrb[0].mxu0
        %494 = vmatprep.mubr.f32.mxu0 0.0
        %495 = vmatmul.mubr.f32.gmra.mrb[0].mxu0 %v301
        %v496 = vpop.f32.mrb[0].mxu0
        %v497 = vadd.f32 0.0, %v496
        %v498 = vpop.f32.mrb[0].mxu0
        %499 = vmatprep.mubr.f32.mxu0 0.0
        %500 = vmatmul.mubr.f32.gmra.mrb[0].mxu0 %v304
        %v501 = vpop.f32.mrb[0].mxu0
        %v502 = vadd.f32 0.0, %v501
        %v503 = vpop.f32.mrb[0].mxu0
        %504 = vmatprep.mubr.f32.mxu0 0.0
        %505 = vmatmul.mubr.f32.gmra.mrb[0].mxu0 %v307
        %v506 = vpop.f32.mrb[0].mxu0
        %v507 = vadd.f32 0.0, %v506
        %v508 = vpop.f32.mrb[0].mxu0
        %509 = vmatprep.mubr.f32.mxu0 0.0
        %510 = vmatmul.mubr.f32.gmra.mrb[0].mxu0 %v310
        %v511 = vpop.f32.mrb[0].mxu0
        %v512 = vadd.f32 0.0, %v511
        %v513 = vpop.f32.mrb[0].mxu0
        %514 = vmatprep.mubr.f32.mxu0 0.0
        %515 = vmatmul.mubr.f32.gmra.mrb[0].mxu0 %v313
        %v516 = vpop.f32.mrb[0].mxu0
        %v517 = vadd.f32 0.0, %v516
        %v518 = vpop.f32.mrb[0].mxu0
        %519 = vmatprep.mubr.f32.mxu0 0.0
        %520 = vmatmul.mubr.f32.gmra.mrb[0].mxu0 %v316
        %v521 = vpop.f32.mrb[0].mxu0
        %v522 = vadd.f32 0.0, %v521
        %v523 = vpop.f32.mrb[0].mxu0
        %524 = vmatprep.mubr.f32.mxu0 0.0
        %525 = vmatmul.mubr.f32.gmra.mrb[0].mxu0 %v319
        %v526 = vpop.f32.mrb[0].mxu0
        %v527 = vadd.f32 0.0, %v526
        %v528 = vpop.f32.mrb[0].mxu0
        %529 = vmatprep.mubr.f32.mxu0 0.0
        %530 = vmatmul.mubr.f32.gmra.mrb[0].mxu0 %v322
        %v531 = vpop.f32.mrb[0].mxu0
        %v532 = vadd.f32 0.0, %v531
        %v533 = vpop.f32.mrb[0].mxu0
        %534 = vmatprep.mubr.f32.mxu0 0.0
        %535 = vmatmul.mubr.f32.gmra.mrb[0].mxu0 %v325
        %v536 = vpop.f32.mrb[0].mxu0
        %v537 = vadd.f32 0.0, %v536
        %v538 = vpop.f32.mrb[0].mxu0
        %539 = vmatprep.mubr.f32.mxu0 0.0
        %540 = vmatmul.mubr.f32.gmra.mrb[0].mxu0 %v328
        %v541 = vpop.f32.mrb[0].mxu0
        %v542 = vadd.f32 0.0, %v541
        %v543 = vpop.f32.mrb[0].mxu0
        %544 = vmatprep.mubr.f32.mxu0 0.0
        %545 = vmatmul.mubr.f32.gmra.mrb[0].mxu0 %v331
        %v546 = vpop.f32.mrb[0].mxu0
        %v547 = vadd.f32 0.0, %v546
        %v548 = vpop.f32.mrb[0].mxu0
        %549 = vmatprep.mubr.f32.mxu0 0.0
        %550 = vmatmul.mubr.f32.gmra.mrb[0].mxu0 %v334
        %v551 = vpop.f32.mrb[0].mxu0
        %v552 = vadd.f32 0.0, %v551
        %v553 = vpop.f32.mrb[0].mxu0
        %554 = vmatprep.mubr.f32.mxu0 0.0
        %555 = vmatmul.mubr.f32.gmra.mrb[0].mxu0 %v337
        %v556 = vpop.f32.mrb[0].mxu0
        %v557 = vadd.f32 0.0, %v556
        %v558 = vpop.f32.mrb[0].mxu0
        %559 = vmatprep.mubr.f32.mxu0 0.0
        %560 = vmatmul.mubr.f32.gmra.mrb[0].mxu0 %v340
        %v561 = vpop.f32.mrb[0].mxu0
        %v562 = vadd.f32 0.0, %v561
        %v563 = vpop.f32.mrb[0].mxu0
        %564 = vmatprep.mubr.f32.mxu0 0.0
        %565 = vmatmul.mubr.f32.gmra.mrb[0].mxu0 %v343
        %v566 = vpop.f32.mrb[0].mxu0
        %v567 = vadd.f32 0.0, %v566
        %v568 = vpop.f32.mrb[0].mxu0
        %569 = vmatprep.mubr.f32.mxu0 0.0
        %570 = vmatmul.mubr.f32.gmra.mrb[0].mxu0 %v346
        %v571 = vpop.f32.mrb[0].mxu0
        %v572 = vadd.f32 0.0, %v571
        %v573 = vpop.f32.mrb[0].mxu0
        %574 = vmatprep.mubr.f32.mxu0 0.0
        %575 = vmatmul.mubr.f32.gmra.mrb[0].mxu0 %v349
        %v576 = vpop.f32.mrb[0].mxu0
        %v577 = vadd.f32 0.0, %v576
        %v578 = vpop.f32.mrb[0].mxu0
        %579 = vdwg.mxu0
        %vm580 = vcmask 31744
        %581 = vst.msk [vmem:[%s207] sm:$0xff] %vm580, %v422
        %582 = vst.msk [vmem:[%s207 + $0x8] sm:$0xff] %vm580, %v427
        %583 = vst.msk [vmem:[%s207 + $0x10] sm:$0xff] %vm580, %v432
        %584 = vst.msk [vmem:[%s207 + $0x18] sm:$0xff] %vm580, %v437
        %585 = vst.msk [vmem:[%s207 + $0x20] sm:$0xff] %vm580, %v442
        %586 = vst.msk [vmem:[%s207 + $0x28] sm:$0xff] %vm580, %v447
        %587 = vst.msk [vmem:[%s207 + $0x30] sm:$0xff] %vm580, %v452
        %588 = vst.msk [vmem:[%s207 + $0x38] sm:$0xff] %vm580, %v457
        %589 = vst.msk [vmem:[%s207 + $0x40] sm:$0xff] %vm580, %v462
        %590 = vst.msk [vmem:[%s207 + $0x48] sm:$0xff] %vm580, %v467
        %591 = vst.msk [vmem:[%s207 + $0x50] sm:$0xff] %vm580, %v472
        %592 = vst.msk [vmem:[%s207 + $0x58] sm:$0xff] %vm580, %v477
        %593 = vst.msk [vmem:[%s207 + $0x60] sm:$0xff] %vm580, %v482
        %594 = vst.msk [vmem:[%s207 + $0x68] sm:$0xff] %vm580, %v487
        %595 = vst.msk [vmem:[%s207 + $0x70] sm:$0xff] %vm580, %v492
        %596 = vst.msk [vmem:[%s207 + $0x78] sm:$0xff] %vm580, %v497
        %597 = vst.msk [vmem:[%s207 + $0x80] sm:$0xff] %vm580, %v502
        %598 = vst.msk [vmem:[%s207 + $0x88] sm:$0xff] %vm580, %v507
        %599 = vst.msk [vmem:[%s207 + $0x90] sm:$0xff] %vm580, %v512
        %600 = vst.msk [vmem:[%s207 + $0x98] sm:$0xff] %vm580, %v517
        %601 = vst.msk [vmem:[%s207 + $0xa0] sm:$0xff] %vm580, %v522
        %602 = vst.msk [vmem:[%s207 + $0xa8] sm:$0xff] %vm580, %v527
        %603 = vst.msk [vmem:[%s207 + $0xb0] sm:$0xff] %vm580, %v532
        %604 = vst.msk [vmem:[%s207 + $0xb8] sm:$0xff] %vm580, %v537
        %605 = vst.msk [vmem:[%s207 + $0xc0] sm:$0xff] %vm580, %v542
        %606 = vst.msk [vmem:[%s207 + $0xc8] sm:$0xff] %vm580, %v547
        %607 = vst.msk [vmem:[%s207 + $0xd0] sm:$0xff] %vm580, %v552
        %608 = vst.msk [vmem:[%s207 + $0xd8] sm:$0xff] %vm580, %v557
        %609 = vst.msk [vmem:[%s207 + $0xe0] sm:$0xff] %vm580, %v562
        %610 = vst.msk [vmem:[%s207 + $0xe8] sm:$0xff] %vm580, %v567
        %611 = vst.msk [vmem:[%s207 + $0xf0] sm:$0xff] %vm580, %v572
        %612 = vst.msk [vmem:[%s207 + $0xf8] sm:$0xff] %vm580, %v577
        %v613 = vsel %vm580, %v422, 0.0
        %v614 = vsel %vm580, %v427, 0.0
        %v615 = vadd.f32 %v613, %v614
        %v616 = vsel %vm580, %v432, 0.0
        %v617 = vadd.f32 %v615, %v616
        %v618 = vsel %vm580, %v437, 0.0
        %v619 = vadd.f32 %v617, %v618
        %v620 = vsel %vm580, %v442, 0.0
        %v621 = vadd.f32 %v619, %v620
        %v622 = vsel %vm580, %v447, 0.0
        %v623 = vadd.f32 %v621, %v622
        %v624 = vsel %vm580, %v452, 0.0
        %v625 = vadd.f32 %v623, %v624
        %v626 = vsel %vm580, %v457, 0.0
        %v627 = vadd.f32 %v625, %v626
        %v628 = vsel %vm580, %v462, 0.0
        %v629 = vadd.f32 %v627, %v628
        %v630 = vsel %vm580, %v467, 0.0
        %v631 = vadd.f32 %v629, %v630
        %v632 = vsel %vm580, %v472, 0.0
        %v633 = vadd.f32 %v631, %v632
        %v634 = vsel %vm580, %v477, 0.0
        %v635 = vadd.f32 %v633, %v634
        %v636 = vsel %vm580, %v482, 0.0
        %v637 = vadd.f32 %v635, %v636
        %v638 = vsel %vm580, %v487, 0.0
        %v639 = vadd.f32 %v637, %v638
        %v640 = vsel %vm580, %v492, 0.0
        %v641 = vadd.f32 %v639, %v640
        %v642 = vsel %vm580, %v497, 0.0
        %v643 = vadd.f32 %v641, %v642
        %v644 = vsel %vm580, %v502, 0.0
        %v645 = vadd.f32 %v643, %v644
        %v646 = vsel %vm580, %v507, 0.0
        %v647 = vadd.f32 %v645, %v646
        %v648 = vsel %vm580, %v512, 0.0
        %v649 = vadd.f32 %v647, %v648
        %v650 = vsel %vm580, %v517, 0.0
        %v651 = vadd.f32 %v649, %v650
        %v652 = vsel %vm580, %v522, 0.0
        %v653 = vadd.f32 %v651, %v652
        %v654 = vsel %vm580, %v527, 0.0
        %v655 = vadd.f32 %v653, %v654
        %v656 = vsel %vm580, %v532, 0.0
        %v657 = vadd.f32 %v655, %v656
        %v658 = vsel %vm580, %v537, 0.0
        %v659 = vadd.f32 %v657, %v658
        %v660 = vsel %vm580, %v542, 0.0
        %v661 = vadd.f32 %v659, %v660
        %v662 = vsel %vm580, %v547, 0.0
        %v663 = vadd.f32 %v661, %v662
        %v664 = vsel %vm580, %v552, 0.0
        %v665 = vadd.f32 %v663, %v664
        %v666 = vsel %vm580, %v557, 0.0
        %v667 = vadd.f32 %v665, %v666
        %v668 = vsel %vm580, %v562, 0.0
        %v669 = vadd.f32 %v667, %v668
        %v670 = vsel %vm580, %v567, 0.0
        %v671 = vadd.f32 %v669, %v670
        %v672 = vsel %vm580, %v572, 0.0
        %v673 = vadd.f32 %v671, %v672
        %v674 = vsel %vm580, %v577, 0.0
        %v675 = vadd.f32 %v673, %v674
        %v676 = vrot.slane %v675, 4
        %v677 = vadd.f32 %v675, %v676
        %v678 = vrot.slane %v677, 2
        %v679 = vadd.f32 %v677, %v678
        %v680 = vrot.slane %v679, 1
        %v681 = vadd.f32 %v679, %v680
        %vm682 = vcmask 24576
        %683 = vst.msk [vmem:[%s214] sm:$0x1] %vm682, %v681
        %v684 = vmul.f32 %v422, %v422
        %v685 = vmul.f32 %v427, %v427
        %v686 = vmul.f32 %v432, %v432
        %v687 = vmul.f32 %v437, %v437
        %v688 = vmul.f32 %v442, %v442
        %v689 = vmul.f32 %v447, %v447
        %v690 = vmul.f32 %v452, %v452
        %v691 = vmul.f32 %v457, %v457
        %v692 = vmul.f32 %v462, %v462
        %v693 = vmul.f32 %v467, %v467
        %v694 = vmul.f32 %v472, %v472
        %v695 = vmul.f32 %v477, %v477
        %v696 = vmul.f32 %v482, %v482
        %v697 = vmul.f32 %v487, %v487
        %v698 = vmul.f32 %v492, %v492
        %v699 = vmul.f32 %v497, %v497
        %v700 = vmul.f32 %v502, %v502
        %v701 = vmul.f32 %v507, %v507
        %v702 = vmul.f32 %v512, %v512
        %v703 = vmul.f32 %v517, %v517
        %v704 = vmul.f32 %v522, %v522
        %v705 = vmul.f32 %v527, %v527
        %v706 = vmul.f32 %v532, %v532
        %v707 = vmul.f32 %v537, %v537
        %v708 = vmul.f32 %v542, %v542
        %v709 = vmul.f32 %v547, %v547
        %v710 = vmul.f32 %v552, %v552
        %v711 = vmul.f32 %v557, %v557
        %v712 = vmul.f32 %v562, %v562
        %v713 = vmul.f32 %v567, %v567
        %v714 = vmul.f32 %v572, %v572
        %v715 = vmul.f32 %v577, %v577
        %v716 = vsel %vm580, %v684, 0.0
        %v717 = vsel %vm580, %v685, 0.0
        %v718 = vadd.f32 %v716, %v717
        %v719 = vsel %vm580, %v686, 0.0
        %v720 = vadd.f32 %v718, %v719
        %v721 = vsel %vm580, %v687, 0.0
        %v722 = vadd.f32 %v720, %v721
        %v723 = vsel %vm580, %v688, 0.0
        %v724 = vadd.f32 %v722, %v723
        %v725 = vsel %vm580, %v689, 0.0
        %v726 = vadd.f32 %v724, %v725
        %v727 = vsel %vm580, %v690, 0.0
        %v728 = vadd.f32 %v726, %v727
        %v729 = vsel %vm580, %v691, 0.0
        %v730 = vadd.f32 %v728, %v729
        %v731 = vsel %vm580, %v692, 0.0
        %v732 = vadd.f32 %v730, %v731
        %v733 = vsel %vm580, %v693, 0.0
        %v734 = vadd.f32 %v732, %v733
        %v735 = vsel %vm580, %v694, 0.0
        %v736 = vadd.f32 %v734, %v735
        %v737 = vsel %vm580, %v695, 0.0
        %v738 = vadd.f32 %v736, %v737
        %v739 = vsel %vm580, %v696, 0.0
        %v740 = vadd.f32 %v738, %v739
        %v741 = vsel %vm580, %v697, 0.0
        %v742 = vadd.f32 %v740, %v741
        %v743 = vsel %vm580, %v698, 0.0
        %v744 = vadd.f32 %v742, %v743
        %v745 = vsel %vm580, %v699, 0.0
        %v746 = vadd.f32 %v744, %v745
        %v747 = vsel %vm580, %v700, 0.0
        %v748 = vadd.f32 %v746, %v747
        %v749 = vsel %vm580, %v701, 0.0
        %v750 = vadd.f32 %v748, %v749
        %v751 = vsel %vm580, %v702, 0.0
        %v752 = vadd.f32 %v750, %v751
        %v753 = vsel %vm580, %v703, 0.0
        %v754 = vadd.f32 %v752, %v753
        %v755 = vsel %vm580, %v704, 0.0
        %v756 = vadd.f32 %v754, %v755
        %v757 = vsel %vm580, %v705, 0.0
        %v758 = vadd.f32 %v756, %v757
        %v759 = vsel %vm580, %v706, 0.0
        %v760 = vadd.f32 %v758, %v759
        %v761 = vsel %vm580, %v707, 0.0
        %v762 = vadd.f32 %v760, %v761
        %v763 = vsel %vm580, %v708, 0.0
        %v764 = vadd.f32 %v762, %v763
        %v765 = vsel %vm580, %v709, 0.0
        %v766 = vadd.f32 %v764, %v765
        %v767 = vsel %vm580, %v710, 0.0
        %v768 = vadd.f32 %v766, %v767
        %v769 = vsel %vm580, %v711, 0.0
        %v770 = vadd.f32 %v768, %v769
        %v771 = vsel %vm580, %v712, 0.0
        %v772 = vadd.f32 %v770, %v771
        %v773 = vsel %vm580, %v713, 0.0
        %v774 = vadd.f32 %v772, %v773
        %v775 = vsel %vm580, %v714, 0.0
        %v776 = vadd.f32 %v774, %v775
        %v777 = vsel %vm580, %v715, 0.0
        %v778 = vadd.f32 %v776, %v777
        %v779 = vrot.slane %v778, 4
        %v780 = vadd.f32 %v778, %v779
        %v781 = vrot.slane %v780, 2
        %v782 = vadd.f32 %v780, %v781
        %v783 = vrot.slane %v782, 1
        %v784 = vadd.f32 %v782, %v783
        %785 = vst.msk [vmem:[%s214 + $0x1] sm:$0x1] %vm682, %v784
        %s786 = sand.u32 %s80, 1
        %s787 = scalar_lea.sflag [#allocation4], %s786
        %s788 = sand.u32 %s80, 1
        %s789 = smul.addr %s788, 256
        %s790 = scalar_lea.vmem [#allocation7], %s789
        %s791 = sand.u32 %s106, 1
        %s792 = scalar_lea.sflag [#allocation9], %s791
        %s793 = sand.u32 %s106, 1
        %s794 = smul.addr %s793, 2
        %s795 = scalar_lea.vmem [#allocation8], %s794
        // Predicated region
        $region37: #{residual_block.4} parent=27 // pred_check
          %p796 = pneg %p90
        $region38: #{residual_block.4} parent=27 // pred_check_branch
          %798 = sbr.rel (%p796) target = $region40
        $region39: #{residual_block.4} parent=27 // pred_region
          %s799 = smul.u32 32, %s25
          %s801 = ssub.s32 4096, 4096
          %802 = vsyncadd %s787, %s801
          %s803 = smul.addr %s799, 128
          %s804 = scalar_lea.hbm %s2, %s803
          %s805 = sshll.u32 %s790, 4
          %s806 = int_to_ptr.vmem [resolvable:$true] %s805
          %811 = dma.vmem_to_hbm [thread:$0]  %s806, 4096, %s804, %s787, 128, 128, 8
        $region40: #{residual_block.4} parent=27 // pred_fallthru
          _
        // Predicated region
        $region41: #{residual_block.4} parent=27 // pred_check
          %p812 = pneg %p116
        $region42: #{residual_block.4} parent=27 // pred_check_branch
          %814 = sbr.rel (%p812) target = $region44
        $region43: #{residual_block.4} parent=27 // pred_region
          %s816 = ssub.s32 32, 32
          %817 = vsyncadd %s792, %s816
          %s818 = smul.addr %s25, 32
          %s819 = scalar_lea.hbm %s3, %s818
          %s821 = sshll.u32 %s795, 4
          %s822 = int_to_ptr.vmem [resolvable:$true] %s821
          %824 = dma.vmem_to_hbm [thread:$0]  %s822, 32, %s819, %s792
        $region44: #{residual_block.4} parent=27 // pred_fallthru
          _
      $region28: #{residual_block.4} parent=5 // pred_fallthru
        _
      %p825 = scmp.le.s32.totalorder 2, %s20
      // Predicated region
      $region45: #{residual_block.4} parent=5 // pred_check
        %p826 = pneg %p825
      $region46: #{residual_block.4} parent=5 // pred_check_branch
        %828 = sbr.rel (%p826) target = $region48
      $region47: #{residual_block.4} parent=5 // pred_region
        %s829 = ssub.s32 %s20, 2
        // Predicated region
        $region49: #{residual_block.4} parent=47 // pred_check
          %p830 = pneg %p96
        $region50: #{residual_block.4} parent=47 // pred_check_branch
          %832 = sbr.rel (%p830) target = $region52
        $region51: #{residual_block.4} parent=47 // pred_region
          %s833 = sand.u32 %s81, 1
          %s834 = scalar_lea.sflag [#allocation4], %s833
          %s835 = sand.u32 %s81, 1
          %s836 = smul.addr %s835, 256
          %s837 = scalar_lea.vmem [#allocation7], %s836
          %838 = dma.done %s834, 4096
        $region52: #{residual_block.4} parent=47 // pred_fallthru
          _
        // Predicated region
        $region53: #{residual_block.4} parent=47 // pred_check
          %p839 = pneg %p122
        $region54: #{residual_block.4} parent=47 // pred_check_branch
          %841 = sbr.rel (%p839) target = $region56
        $region55: #{residual_block.4} parent=47 // pred_region
          %s842 = sand.u32 %s107, 1
          %s843 = scalar_lea.sflag [#allocation9], %s842
          %s844 = sand.u32 %s107, 1
          %s845 = smul.addr %s844, 2
          %s846 = scalar_lea.vmem [#allocation8], %s845
          %847 = dma.done %s843, 32
        $region56: #{residual_block.4} parent=47 // pred_fallthru
          _
      $region48: #{residual_block.4} parent=5 // pred_fallthru
        _
    $region6: #{residual_block.4} parent=1 // loop_footer
      %s24 = sadd.s32 1, %s20
    $region7: #{residual_block.4} parent=1 // loop_footer_branch
      %19 = sbr.rel target = $region3
    $region8: #{residual_block.4} parent=1 // loop_exit
      _
    %848 = vsyncpa [#allocation3], 1
    %s849 = scalar_lea.sflag [#allocation3], 1
    %850 = vsyncpa %s849, 1
    %851 = vsyncpa [#allocation6], 1
    %852 = vsyncpa [#allocation4], 1
    %s853 = scalar_lea.sflag [#allocation4], 1
    %854 = vsyncpa %s853, 1
    %855 = vsyncpa [#allocation9], 1
    %s856 = scalar_lea.sflag [#allocation9], 1
    %857 = vsyncpa %s856, 1

// kernel: residual_block.7
$region0: #{residual_block.7}
  #allocation0 [shape = 'u32[]', space=smem, size = 0x4, offset = 0x4, fixed_abs, tag = 'smem constant byte address 0x4 - core index']
  #allocation1 [shape = 'u32[144,128]{1,0:T(1,128)}', space=vmem, size = 0x12000, scoped, tag = 'internal scratch']
  %s0 = inlined_call_operand.hbm [shape: f32[512,4], index: 0, kind: input, shape index: {}]
  %s1 = inlined_call_operand.hbm [shape: f32[512,4], index: 1, kind: input, shape index: {}]
  %s2 = inlined_call_operand.hbm [shape: f32[1,4], index: 2, kind: input, shape index: {}]
  %s3 = inlined_call_operand.hbm [shape: f32[1,4], index: 3, kind: input, shape index: {}]
  %s4 = inlined_call_operand.hbm [shape: f32[512,4], index: 4, kind: output, shape index: {}]
  %s5 = sld [smem:[#allocation0]]
  $region65: #{residual_block.7} parent=0
    _
  %s7 = ssub.s32 1, %s5
  %s8 = scalar_select 0, %s7, %s5
  $region1: #{residual_block.7} parent=0
    #allocation2 [shape = 'u8[262144]{0}', space=vmem, size = 0x40000, scoped, tag = 'input window, operand 0']
    #allocation3 [shape = 's32[2]{0}', space=sflag, size = 0x8, scoped, tag = 'scoped memory for residual_block.7']
    #allocation4 [shape = 's32[2]{0}', space=sflag, size = 0x8, scoped, tag = 'scoped memory for residual_block.7']
    #allocation5 [shape = 'u8[262144]{0}', space=vmem, size = 0x40000, scoped, tag = 'input window, operand 1']
    #allocation6 [shape = 's32[2]{0}', space=sflag, size = 0x8, scoped, tag = 'scoped memory for residual_block.7']
    #allocation7 [shape = 'u8[512]{0}', space=vmem, size = 0x400, scoped, tag = 'input window, operand 2, single buffered']
    #allocation8 [shape = 'u8[512]{0}', space=vmem, size = 0x400, scoped, tag = 'input window, operand 3, single buffered']
    #allocation9 [shape = 's32[1]{0}', space=sflag, size = 0x4, scoped, tag = 'scoped memory for residual_block.7']
    #allocation10 [shape = 'u8[262144]{0}', space=vmem, size = 0x40000, scoped, tag = 'output window, operand 0']
    %9 = vsyncpa [#allocation3], 0
    %s10 = scalar_lea.sflag [#allocation3], 1
    %11 = vsyncpa %s10, 0
    %12 = vsyncpa [#allocation6], 0
    %s13 = scalar_lea.sflag [#allocation6], 1
    %14 = vsyncpa %s13, 0
    %15 = vsyncpa [#allocation9], 0
    %16 = vsyncpa [#allocation4], 0
    %s17 = scalar_lea.sflag [#allocation4], 1
    %18 = vsyncpa %s17, 0
    loop: start=0, step=1, limit=4
    $region2: #{residual_block.7} parent=1 // loop_pre_header
      _
    $region3: #{residual_block.7} parent=1 // loop_header
      %s20 = sphi 0, %s24
      %p21 = scmp.ge.s32.totalorder %s20, 4
      %s30 = sphi 0, %s32
      %s33 = sphi 0, %s30
      %s34 = sphi 0, %s33
      %s50 = sphi 0, %s34
      %s56 = sphi 0, %s58
      %s59 = sphi 0, %s56
      %s60 = sphi 0, %s59
      %s76 = sphi 0, %s60
      %s80 = sphi 0, %s80
      %s82 = sphi 0, %s80
      %s83 = sphi 0, %s82
      %s97 = sphi 0, %s83
      %s101 = sphi 0, %s101
      %s103 = sphi 0, %s101
      %s104 = sphi 0, %s103
      %s118 = sphi 0, %s104
      %s124 = sphi 0, %s126
      %s127 = sphi 0, %s124
      %s128 = sphi 0, %s127
      %s144 = sphi 0, %s128
    $region4: #{residual_block.7} parent=1 // loop_header_branch
      %23 = sbr.rel (%p21) target = $region8
    $region5: #{residual_block.7} parent=1 // loop_body
      %s25 = ssub.s32 %s20, 1
      %s26 = ssub.s32 %s20, 2
      %s27 = sadd.s32 %s20, 1
      %s28 = ssub.s32 %s20, %s27
      %p29 = scmp.eq.s32.totalorder %s28, 0
      %s31 = sadd.s32 %s30, 1
      %s32 = scalar_select %p29, %s30, %s31
      %p35 = pneg %p29
      %p36 = scmp.eq.s32.totalorder %s20, 1
      %p37 = por %p35, %p36
      %p38 = scmp.ne.s32.totalorder %s30, %s33
      %p39 = scmp.eq.s32.totalorder %s20, 0
      %p40 = por %p38, %p39
      %p41 = scmp.ne.s32.totalorder %s30, %s33
      %p42 = scmp.eq.s32.totalorder %s25, 1
      %p43 = por %p41, %p42
      %p44 = scmp.ne.s32.totalorder %s33, %s34
      %p45 = scmp.eq.s32.totalorder %s25, 0
      %p46 = por %p44, %p45
      %p47 = scmp.ne.s32.totalorder %s33, %s34
      %p48 = scmp.eq.s32.totalorder %s26, 1
      %p49 = por %p47, %p48
      %p51 = scmp.ne.s32.totalorder %s34, %s50
      %p52 = scmp.eq.s32.totalorder %s26, 0
      %p53 = por %p51, %p52
      %s54 = ssub.s32 %s20, %s27
      %p55 = scmp.eq.s32.totalorder %s54, 0
      %s57 = sadd.s32 %s56, 1
      %s58 = scalar_select %p55, %s56, %s57
      %p61 = pneg %p55
      %p62 = scmp.eq.s32.totalorder %s20, 1
      %p63 = por %p61, %p62
      %p64 = scmp.ne.s32.totalorder %s56, %s59
      %p65 = scmp.eq.s32.totalorder %s20, 0
      %p66 = por %p64, %p65
      %p67 = scmp.ne.s32.totalorder %s56, %s59
      %p68 = scmp.eq.s32.totalorder %s25, 1
      %p69 = por %p67, %p68
      %p70 = scmp.ne.s32.totalorder %s59, %s60
      %p71 = scmp.eq.s32.totalorder %s25, 0
      %p72 = por %p70, %p71
      %p73 = scmp.ne.s32.totalorder %s59, %s60
      %p74 = scmp.eq.s32.totalorder %s26, 1
      %p75 = por %p73, %p74
      %p77 = scmp.ne.s32.totalorder %s60, %s76
      %p78 = scmp.eq.s32.totalorder %s26, 0
      %p79 = por %p77, %p78
      %s81 = sadd.s32 %s80, 1
      %p84 = scmp.eq.s32.totalorder %s20, 1
      %p85 = scmp.ne.s32.totalorder %s80, %s82
      %p86 = scmp.eq.s32.totalorder %s20, 0
      %p87 = por %p85, %p86
      %p88 = scmp.ne.s32.totalorder %s80, %s82
      %p89 = scmp.eq.s32.totalorder %s25, 1
      %p90 = por %p88, %p89
      %p91 = scmp.ne.s32.totalorder %s82, %s83
      %p92 = scmp.eq.s32.totalorder %s25, 0
      %p93 = por %p91, %p92
      %p94 = scmp.ne.s32.totalorder %s82, %s83
      %p95 = scmp.eq.s32.totalorder %s26, 1
      %p96 = por %p94, %p95
      %p98 = scmp.ne.s32.totalorder %s83, %s97
      %p99 = scmp.eq.s32.totalorder %s26, 0
      %p100 = por %p98, %p99
      %s102 = sadd.s32 %s101, 1
      %p105 = scmp.eq.s32.totalorder %s20, 1
      %p106 = scmp.ne.s32.totalorder %s101, %s103
      %p107 = scmp.eq.s32.totalorder %s20, 0
      %p108 = por %p106, %p107
      %p109 = scmp.ne.s32.totalorder %s101, %s103
      %p110 = scmp.eq.s32.totalorder %s25, 1
      %p111 = por %p109, %p110
      %p112 = scmp.ne.s32.totalorder %s103, %s104
      %p113 = scmp.eq.s32.totalorder %s25, 0
      %p114 = por %p112, %p113
      %p115 = scmp.ne.s32.totalorder %s103, %s104
      %p116 = scmp.eq.s32.totalorder %s26, 1
      %p117 = por %p115, %p116
      %p119 = scmp.ne.s32.totalorder %s104, %s118
      %p120 = scmp.eq.s32.totalorder %s26, 0
      %p121 = por %p119, %p120
      %s122 = ssub.s32 %s20, %s27
      %p123 = scmp.eq.s32.totalorder %s122, 0
      %s125 = sadd.s32 %s124, 1
      %s126 = scalar_select %p123, %s124, %s125
      %p129 = pneg %p123
      %p130 = scmp.eq.s32.totalorder %s20, 1
      %p131 = por %p129, %p130
      %p132 = scmp.ne.s32.totalorder %s124, %s127
      %p133 = scmp.eq.s32.totalorder %s20, 0
      %p134 = por %p132, %p133
      %p135 = scmp.ne.s32.totalorder %s124, %s127
      %p136 = scmp.eq.s32.totalorder %s25, 1
      %p137 = por %p135, %p136
      %p138 = scmp.ne.s32.totalorder %s127, %s128
      %p139 = scmp.eq.s32.totalorder %s25, 0
      %p140 = por %p138, %p139
      %p141 = scmp.ne.s32.totalorder %s127, %s128
      %p142 = scmp.eq.s32.totalorder %s26, 1
      %p143 = por %p141, %p142
      %p145 = scmp.ne.s32.totalorder %s128, %s144
      %p146 = scmp.eq.s32.totalorder %s26, 0
      %p147 = por %p145, %p146
      %p148 = scmp.le.s32.totalorder 1, %s20
      %p149 = scmp.lt.s32.totalorder %s20, 3
      %p150 = pnand %p148, %p149
      %p151 = pneg %p150
      // Predicated region
      $region9: #{residual_block.7} parent=5 // pred_check
        _
      $region10: #{residual_block.7} parent=5 // pred_check_branch
        %153 = sbr.rel (%p150) target = $region12
      $region11: #{residual_block.7} parent=5 // pred_region
        %s154 = ssub.s32 %s20, 1
        // Predicated region
        $region13: #{residual_block.7} parent=11 // pred_check
          %p155 = pneg %p93
        $region14: #{residual_block.7} parent=11 // pred_check_branch
          %157 = sbr.rel (%p155) target = $region16
        $region15: #{residual_block.7} parent=11 // pred_region
          %s159 = ssub.s32 16, 16
          %160 = vsyncadd [#allocation6], %s159
          %s162 = sshll.u32 [#allocation7], 4
          %s163 = int_to_ptr.vmem [resolvable:$true] %s162
          %165 = dma.hbm_to_vmem [thread:$0]  %s2, 16, %s163, [#allocation6]
        $region16: #{residual_block.7} parent=11 // pred_fallthru
          _
        // Predicated region
        $region17: #{residual_block.7} parent=11 // pred_check
          %p166 = pneg %p114
        $region18: #{residual_block.7} parent=11 // pred_check_branch
          %168 = sbr.rel (%p166) target = $region20
        $region19: #{residual_block.7} parent=11 // pred_region
          %s170 = ssub.s32 16, 16
          %171 = vsyncadd [#allocation9], %s170
          %s173 = sshll.u32 [#allocation8], 4
          %s174 = int_to_ptr.vmem [resolvable:$true] %s173
          %176 = dma.hbm_to_vmem [thread:$0]  %s3, 16, %s174, [#allocation9]
        $region20: #{residual_block.7} parent=11 // pred_fallthru
          _
      $region12: #{residual_block.7} parent=5 // pred_fallthru
        _
      %p177 = scmp.lt.s32.totalorder %s20, 2
      // Predicated region
      $region21: #{residual_block.7} parent=5 // pred_check
        %p178 = pneg %p177
      $region22: #{residual_block.7} parent=5 // pred_check_branch
        %180 = sbr.rel (%p178) target = $region24
      $region23: #{residual_block.7} parent=5 // pred_region
        // Predicated region
        $region25: #{residual_block.7} parent=23 // pred_check
          %p181 = pneg %p40
        $region26: #{residual_block.7} parent=23 // pred_check_branch
          %183 = sbr.rel (%p181) target = $region28
        $region27: #{residual_block.7} parent=23 // pred_region
          %s184 = sand.u32 %s30, 1
          %s185 = scalar_lea.sflag [#allocation3], %s184
          %s186 = sand.u32 %s30, 1
          %s187 = smul.addr %s186, 256
          %s188 = scalar_lea.vmem [#allocation2], %s187
          %s189 = smul.u32 32, %s20
          %s191 = ssub.s32 4096, 4096
          %192 = vsyncadd %s185, %s191
          %s193 = smul.addr %s189, 128
          %s194 = scalar_lea.hbm %s0, %s193
          %s195 = sshll.u32 %s188, 4
          %s196 = int_to_ptr.vmem [resolvable:$true] %s195
          %201 = dma.hbm_to_vmem [thread:$0]  %s194, 4096, %s196, %s185, 128, 128, 8
        $region28: #{residual_block.7} parent=23 // pred_fallthru
          _
        // Predicated region
        $region29: #{residual_block.7} parent=23 // pred_check
          %p202 = pneg %p66
        $region30: #{residual_block.7} parent=23 // pred_check_branch
          %204 = sbr.rel (%p202) target = $region32
        $region31: #{residual_block.7} parent=23 // pred_region
          %s205 = sand.u32 %s20, 1
          %s206 = scalar_lea.sflag [#allocation6], %s205
          %s207 = sand.u32 %s56, 1
          %s208 = smul.addr %s207, 256
          %s209 = scalar_lea.vmem [#allocation5], %s208
          %s210 = smul.u32 32, %s20
          %s212 = ssub.s32 4096, 4096
          %213 = vsyncadd %s206, %s212
          %s214 = smul.addr %s210, 128
          %s215 = scalar_lea.hbm %s1, %s214
          %s216 = sshll.u32 %s209, 4
          %s217 = int_to_ptr.vmem [resolvable:$true] %s216
          %222 = dma.hbm_to_vmem [thread:$0]  %s215, 4096, %s217, %s206, 128, 128, 8
        $region32: #{residual_block.7} parent=23 // pred_fallthru
          _
      $region24: #{residual_block.7} parent=5 // pred_fallthru
        _
      %p223 = scmp.le.s32.totalorder 1, %s20
      %p224 = scmp.lt.s32.totalorder %s20, 3
      %p225 = pnand %p223, %p224
      %p226 = pneg %p225
      // Predicated region
      $region33: #{residual_block.7} parent=5 // pred_check
        _
      $region34: #{residual_block.7} parent=5 // pred_check_branch
        %228 = sbr.rel (%p225) target = $region36
      $region35: #{residual_block.7} parent=5 // pred_region
        %s229 = ssub.s32 %s20, 1
        %s230 = sand.u32 %s33, 1
        %s231 = scalar_lea.sflag [#allocation3], %s230
        %s232 = sand.u32 %s33, 1
        %s233 = smul.addr %s232, 256
        %s234 = scalar_lea.vmem [#allocation2], %s233
        // Predicated region
        $region37: #{residual_block.7} parent=35 // pred_check
          %p235 = pneg %p46
        $region38: #{residual_block.7} parent=35 // pred_check_branch
          %237 = sbr.rel (%p235) target = $region40
        $region39: #{residual_block.7} parent=35 // pred_region
          %238 = dma.done %s231, 4096
        $region40: #{residual_block.7} parent=35 // pred_fallthru
          _
        %s239 = sand.u32 %s25, 1
        %s240 = scalar_lea.sflag [#allocation6], %s239
        %s241 = sand.u32 %s59, 1
        %s242 = smul.addr %s241, 256
        %s243 = scalar_lea.vmem [#allocation5], %s242
        // Predicated region
        $region41: #{residual_block.7} parent=35 // pred_check
          %p244 = pneg %p72
        $region42: #{residual_block.7} parent=35 // pred_check_branch
          %246 = sbr.rel (%p244) target = $region44
        $region43: #{residual_block.7} parent=35 // pred_region
          %247 = dma.done %s240, 4096
        $region44: #{residual_block.7} parent=35 // pred_fallthru
          _
        // Predicated region
        $region45: #{residual_block.7} parent=35 // pred_check
          %p248 = pneg %p93
        $region46: #{residual_block.7} parent=35 // pred_check_branch
          %250 = sbr.rel (%p248) target = $region48
        $region47: #{residual_block.7} parent=35 // pred_region
          %251 = dma.done [#allocation6], 16
        $region48: #{residual_block.7} parent=35 // pred_fallthru
          _
        // Predicated region
        $region49: #{residual_block.7} parent=35 // pred_check
          %p252 = pneg %p114
        $region50: #{residual_block.7} parent=35 // pred_check_branch
          %254 = sbr.rel (%p252) target = $region52
        $region51: #{residual_block.7} parent=35 // pred_region
          %255 = dma.done [#allocation9], 16
        $region52: #{residual_block.7} parent=35 // pred_fallthru
          _
        %s256 = sand.u32 %s33, 1
        %s257 = scalar_lea.sflag [#allocation3], %s256
        %s258 = sand.u32 %s33, 1
        %s259 = smul.addr %s258, 256
        %s260 = scalar_lea.vmem [#allocation2], %s259
        %p261 = pneg %p46
        %p262 = pneg %p43
        %s263 = sand.u32 %s25, 1
        %s264 = scalar_lea.sflag [#allocation6], %s263
        %s265 = sand.u32 %s59, 1
        %s266 = smul.addr %s265, 256
        %s267 = scalar_lea.vmem [#allocation5], %s266
        %p268 = pneg %p72
        %p269 = pneg %p69
        %p270 = pneg %p93
        %p271 = pneg %p90
        %p272 = pneg %p114
        %p273 = pneg %p111
        %p274 = pneg %p140
        %p275 = pneg %p137
        %s276 = sand.u32 %s127, 1
        %s277 = scalar_lea.sflag [#allocation4], %s276
        %s278 = sand.u32 %s127, 1
        %s279 = smul.addr %s278, 256
        %s280 = scalar_lea.vmem [#allocation10], %s279
        %s281 = smul.u32 32, %s25
        %s282 = smul.u32 32, %s25
        %s283 = smul.u32 32, %s25
        %v284 = vld [vmem:[%s234] sm:$0xff]
        %v285 = vld [vmem:[%s234 + $0x8] sm:$0xff]
        %v286 = vld [vmem:[%s234 + $0x10] sm:$0xff]
        %v287 = vld [vmem:[%s234 + $0x18] sm:$0xff]
        %v288 = vld [vmem:[%s234 + $0x20] sm:$0xff]
        %v289 = vld [vmem:[%s234 + $0x28] sm:$0xff]
        %v290 = vld [vmem:[%s234 + $0x30] sm:$0xff]
        %v291 = vld [vmem:[%s234 + $0x38] sm:$0xff]
        %v292 = vld [vmem:[%s234 + $0x40] sm:$0xff]
        %v293 = vld [vmem:[%s234 + $0x48] sm:$0xff]
        %v294 = vld [vmem:[%s234 + $0x50] sm:$0xff]
        %v295 = vld [vmem:[%s234 + $0x58] sm:$0xff]
        %v296 = vld [vmem:[%s234 + $0x60] sm:$0xff]
        %v297 = vld [vmem:[%s234 + $0x68] sm:$0xff]
        %v298 = vld [vmem:[%s234 + $0x70] sm:$0xff]
        %v299 = vld [vmem:[%s234 + $0x78] sm:$0xff]
        %v300 = vld [vmem:[%s234 + $0x80] sm:$0xff]
        %v301 = vld [vmem:[%s234 + $0x88] sm:$0xff]
        %v302 = vld [vmem:[%s234 + $0x90] sm:$0xff]
        %v303 = vld [vmem:[%s234 + $0x98] sm:$0xff]
        %v304 = vld [vmem:[%s234 + $0xa0] sm:$0xff]
        %v305 = vld [vmem:[%s234 + $0xa8] sm:$0xff]
        %v306 = vld [vmem:[%s234 + $0xb0] sm:$0xff]
        %v307 = vld [vmem:[%s234 + $0xb8] sm:$0xff]
        %v308 = vld [vmem:[%s234 + $0xc0] sm:$0xff]
        %v309 = vld [vmem:[%s234 + $0xc8] sm:$0xff]
        %v310 = vld [vmem:[%s234 + $0xd0] sm:$0xff]
        %v311 = vld [vmem:[%s234 + $0xd8] sm:$0xff]
        %v312 = vld [vmem:[%s234 + $0xe0] sm:$0xff]
        %v313 = vld [vmem:[%s234 + $0xe8] sm:$0xff]
        %v314 = vld [vmem:[%s234 + $0xf0] sm:$0xff]
        %v315 = vld [vmem:[%s234 + $0xf8] sm:$0xff]
        %v316 = vld [vmem:[#allocation7] sm:$0x1]
        %v318 = vlaneseq
        %v319 = vshrl.u32 %v318, 7
        %v320 = vsub.s32 0, %v319
        %v321 = vrot.slane %v316, %v320
        %v323 = vmul.f32 %v284, %v321
        %v324 = vmul.f32 %v285, %v321
        %v325 = vmul.f32 %v286, %v321
        %v326 = vmul.f32 %v287, %v321
        %v327 = vmul.f32 %v288, %v321
        %v328 = vmul.f32 %v289, %v321
        %v329 = vmul.f32 %v290, %v321
        %v330 = vmul.f32 %v291, %v321
        %v331 = vmul.f32 %v292, %v321
        %v332 = vmul.f32 %v293, %v321
        %v333 = vmul.f32 %v294, %v321
        %v334 = vmul.f32 %v295, %v321
        %v335 = vmul.f32 %v296, %v321
        %v336 = vmul.f32 %v297, %v321
        %v337 = vmul.f32 %v298, %v321
        %v338 = vmul.f32 %v299, %v321
        %v339 = vmul.f32 %v300, %v321
        %v340 = vmul.f32 %v301, %v321
        %v341 = vmul.f32 %v302, %v321
        %v342 = vmul.f32 %v303, %v321
        %v343 = vmul.f32 %v304, %v321
        %v344 = vmul.f32 %v305, %v321
        %v345 = vmul.f32 %v306, %v321
        %v346 = vmul.f32 %v307, %v321
        %v347 = vmul.f32 %v308, %v321
        %v348 = vmul.f32 %v309, %v321
        %v349 = vmul.f32 %v310, %v321
        %v350 = vmul.f32 %v311, %v321
        %v351 = vmul.f32 %v312, %v321
        %v352 = vmul.f32 %v313, %v321
        %v353 = vmul.f32 %v314, %v321
        %v354 = vmul.f32 %v315, %v321
        %v355 = vld [vmem:[#allocation8] sm:$0x1]
        %v357 = vlaneseq
        %v358 = vshrl.u32 %v357, 7
        %v359 = vsub.s32 0, %v358
        %v360 = vrot.slane %v355, %v359
        %v362 = vadd.f32 %v323, %v360
        %v363 = vadd.f32 %v324, %v360
        %v364 = vadd.f32 %v325, %v360
        %v365 = vadd.f32 %v326, %v360
        %v366 = vadd.f32 %v327, %v360
        %v367 = vadd.f32 %v328, %v360
        %v368 = vadd.f32 %v329, %v360
        %v369 = vadd.f32 %v330, %v360
        %v370 = vadd.f32 %v331, %v360
        %v371 = vadd.f32 %v332, %v360
        %v372 = vadd.f32 %v333, %v360
        %v373 = vadd.f32 %v334, %v360
        %v374 = vadd.f32 %v335, %v360
        %v375 = vadd.f32 %v336, %v360
        %v376 = vadd.f32 %v337, %v360
        %v377 = vadd.f32 %v338, %v360
        %v378 = vadd.f32 %v339, %v360
        %v379 = vadd.f32 %v340, %v360
        %v380 = vadd.f32 %v341, %v360
        %v381 = vadd.f32 %v342, %v360
        %v382 = vadd.f32 %v343, %v360
        %v383 = vadd.f32 %v344, %v360
        %v384 = vadd.f32 %v345, %v360
        %v385 = vadd.f32 %v346, %v360
        %v386 = vadd.f32 %v347, %v360
        %v387 = vadd.f32 %v348, %v360
        %v388 = vadd.f32 %v349, %v360
        %v389 = vadd.f32 %v350, %v360
        %v390 = vadd.f32 %v351, %v360
        %v391 = vadd.f32 %v352, %v360
        %v392 = vadd.f32 %v353, %v360
        %v393 = vadd.f32 %v354, %v360
        %v394 = vld [vmem:[%s243] sm:$0xff]
        %v395 = vld [vmem:[%s243 + $0x8] sm:$0xff]
        %v396 = vld [vmem:[%s243 + $0x10] sm:$0xff]
        %v397 = vld [vmem:[%s243 + $0x18] sm:$0xff]
        %v398 = vld [vmem:[%s243 + $0x20] sm:$0xff]
        %v399 = vld [vmem:[%s243 + $0x28] sm:$0xff]
        %v400 = vld [vmem:[%s243 + $0x30] sm:$0xff]
        %v401 = vld [vmem:[%s243 + $0x38] sm:$0xff]
        %v402 = vld [vmem:[%s243 + $0x40] sm:$0xff]
        %v403 = vld [vmem:[%s243 + $0x48] sm:$0xff]
        %v404 = vld [vmem:[%s243 + $0x50] sm:$0xff]
        %v405 = vld [vmem:[%s243 + $0x58] sm:$0xff]
        %v406 = vld [vmem:[%s243 + $0x60] sm:$0xff]
        %v407 = vld [vmem:[%s243 + $0x68] sm:$0xff]
        %v408 = vld [vmem:[%s243 + $0x70] sm:$0xff]
        %v409 = vld [vmem:[%s243 + $0x78] sm:$0xff]
        %v410 = vld [vmem:[%s243 + $0x80] sm:$0xff]
        %v411 = vld [vmem:[%s243 + $0x88] sm:$0xff]
        %v412 = vld [vmem:[%s243 + $0x90] sm:$0xff]
        %v413 = vld [vmem:[%s243 + $0x98] sm:$0xff]
        %v414 = vld [vmem:[%s243 + $0xa0] sm:$0xff]
        %v415 = vld [vmem:[%s243 + $0xa8] sm:$0xff]
        %v416 = vld [vmem:[%s243 + $0xb0] sm:$0xff]
        %v417 = vld [vmem:[%s243 + $0xb8] sm:$0xff]
        %v418 = vld [vmem:[%s243 + $0xc0] sm:$0xff]
        %v419 = vld [vmem:[%s243 + $0xc8] sm:$0xff]
        %v420 = vld [vmem:[%s243 + $0xd0] sm:$0xff]
        %v421 = vld [vmem:[%s243 + $0xd8] sm:$0xff]
        %v422 = vld [vmem:[%s243 + $0xe0] sm:$0xff]
        %v423 = vld [vmem:[%s243 + $0xe8] sm:$0xff]
        %v424 = vld [vmem:[%s243 + $0xf0] sm:$0xff]
        %v425 = vld [vmem:[%s243 + $0xf8] sm:$0xff]
        %v426 = vadd.f32 %v362, %v394
        %v427 = vadd.f32 %v363, %v395
        %v428 = vadd.f32 %v364, %v396
        %v429 = vadd.f32 %v365, %v397
        %v430 = vadd.f32 %v366, %v398
        %v431 = vadd.f32 %v367, %v399
        %v432 = vadd.f32 %v368, %v400
        %v433 = vadd.f32 %v369, %v401
        %v434 = vadd.f32 %v370, %v402
        %v435 = vadd.f32 %v371, %v403
        %v436 = vadd.f32 %v372, %v404
        %v437 = vadd.f32 %v373, %v405
        %v438 = vadd.f32 %v374, %v406
        %v439 = vadd.f32 %v375, %v407
        %v440 = vadd.f32 %v376, %v408
        %v441 = vadd.f32 %v377, %v409
        %v442 = vadd.f32 %v378, %v410
        %v443 = vadd.f32 %v379, %v411
        %v444 = vadd.f32 %v380, %v412
        %v445 = vadd.f32 %v381, %v413
        %v446 = vadd.f32 %v382, %v414
        %v447 = vadd.f32 %v383, %v415
        %v448 = vadd.f32 %v384, %v416
        %v449 = vadd.f32 %v385, %v417
        %v450 = vadd.f32 %v386, %v418
        %v451 = vadd.f32 %v387, %v419
        %v452 = vadd.f32 %v388, %v420
        %v453 = vadd.f32 %v389, %v421
        %v454 = vadd.f32 %v390, %v422
        %v455 = vadd.f32 %v391, %v423
        %v456 = vadd.f32 %v392, %v424
        %v457 = vadd.f32 %v393, %v425
        %v458 = vmax.f32 %v426, 0.0
        %v459 = vmax.f32 %v427, 0.0
        %v460 = vmax.f32 %v428, 0.0
        %v461 = vmax.f32 %v429, 0.0
        %v462 = vmax.f32 %v430, 0.0
        %v463 = vmax.f32 %v431, 0.0
        %v464 = vmax.f32 %v432, 0.0
        %v465 = vmax.f32 %v433, 0.0
        %v466 = vmax.f32 %v434, 0.0
        %v467 = vmax.f32 %v435, 0.0
        %v468 = vmax.f32 %v436, 0.0
        %v469 = vmax.f32 %v437, 0.0
        %v470 = vmax.f32 %v438, 0.0
        %v471 = vmax.f32 %v439, 0.0
        %v472 = vmax.f32 %v440, 0.0
        %v473 = vmax.f32 %v441, 0.0
        %v474 = vmax.f32 %v442, 0.0
        %v475 = vmax.f32 %v443, 0.0
        %v476 = vmax.f32 %v444, 0.0
        %v477 = vmax.f32 %v445, 0.0
        %v478 = vmax.f32 %v446, 0.0
        %v479 = vmax.f32 %v447, 0.0
        %v480 = vmax.f32 %v448, 0.0
        %v481 = vmax.f32 %v449, 0.0
        %v482 = vmax.f32 %v450, 0.0
        %v483 = vmax.f32 %v451, 0.0
        %v484 = vmax.f32 %v452, 0.0
        %v485 = vmax.f32 %v453, 0.0
        %v486 = vmax.f32 %v454, 0.0
        %v487 = vmax.f32 %v455, 0.0
        %v488 = vmax.f32 %v456, 0.0
        %v489 = vmax.f32 %v457, 0.0
        %vm490 = vcmask 31744
        %491 = vst.msk [vmem:[%s280] sm:$0xff] %vm490, %v458
        %492 = vst.msk [vmem:[%s280 + $0x8] sm:$0xff] %vm490, %v459
        %493 = vst.msk [vmem:[%s280 + $0x10] sm:$0xff] %vm490, %v460
        %494 = vst.msk [vmem:[%s280 + $0x18] sm:$0xff] %vm490, %v461
        %495 = vst.msk [vmem:[%s280 + $0x20] sm:$0xff] %vm490, %v462
        %496 = vst.msk [vmem:[%s280 + $0x28] sm:$0xff] %vm490, %v463
        %497 = vst.msk [vmem:[%s280 + $0x30] sm:$0xff] %vm490, %v464
        %498 = vst.msk [vmem:[%s280 + $0x38] sm:$0xff] %vm490, %v465
        %499 = vst.msk [vmem:[%s280 + $0x40] sm:$0xff] %vm490, %v466
        %500 = vst.msk [vmem:[%s280 + $0x48] sm:$0xff] %vm490, %v467
        %501 = vst.msk [vmem:[%s280 + $0x50] sm:$0xff] %vm490, %v468
        %502 = vst.msk [vmem:[%s280 + $0x58] sm:$0xff] %vm490, %v469
        %503 = vst.msk [vmem:[%s280 + $0x60] sm:$0xff] %vm490, %v470
        %504 = vst.msk [vmem:[%s280 + $0x68] sm:$0xff] %vm490, %v471
        %505 = vst.msk [vmem:[%s280 + $0x70] sm:$0xff] %vm490, %v472
        %506 = vst.msk [vmem:[%s280 + $0x78] sm:$0xff] %vm490, %v473
        %507 = vst.msk [vmem:[%s280 + $0x80] sm:$0xff] %vm490, %v474
        %508 = vst.msk [vmem:[%s280 + $0x88] sm:$0xff] %vm490, %v475
        %509 = vst.msk [vmem:[%s280 + $0x90] sm:$0xff] %vm490, %v476
        %510 = vst.msk [vmem:[%s280 + $0x98] sm:$0xff] %vm490, %v477
        %511 = vst.msk [vmem:[%s280 + $0xa0] sm:$0xff] %vm490, %v478
        %512 = vst.msk [vmem:[%s280 + $0xa8] sm:$0xff] %vm490, %v479
        %513 = vst.msk [vmem:[%s280 + $0xb0] sm:$0xff] %vm490, %v480
        %514 = vst.msk [vmem:[%s280 + $0xb8] sm:$0xff] %vm490, %v481
        %515 = vst.msk [vmem:[%s280 + $0xc0] sm:$0xff] %vm490, %v482
        %516 = vst.msk [vmem:[%s280 + $0xc8] sm:$0xff] %vm490, %v483
        %517 = vst.msk [vmem:[%s280 + $0xd0] sm:$0xff] %vm490, %v484
        %518 = vst.msk [vmem:[%s280 + $0xd8] sm:$0xff] %vm490, %v485
        %519 = vst.msk [vmem:[%s280 + $0xe0] sm:$0xff] %vm490, %v486
        %520 = vst.msk [vmem:[%s280 + $0xe8] sm:$0xff] %vm490, %v487
        %521 = vst.msk [vmem:[%s280 + $0xf0] sm:$0xff] %vm490, %v488
        %522 = vst.msk [vmem:[%s280 + $0xf8] sm:$0xff] %vm490, %v489
        %s523 = sand.u32 %s127, 1
        %s524 = scalar_lea.sflag [#allocation4], %s523
        %s525 = sand.u32 %s127, 1
        %s526 = smul.addr %s525, 256
        %s527 = scalar_lea.vmem [#allocation10], %s526
        // Predicated region
        $region53: #{residual_block.7} parent=35 // pred_check
          %p528 = pneg %p137
        $region54: #{residual_block.7} parent=35 // pred_check_branch
          %530 = sbr.rel (%p528) target = $region56
        $region55: #{residual_block.7} parent=35 // pred_region
          %s531 = smul.u32 32, %s25
          %s533 = ssub.s32 4096, 4096
          %534 = vsyncadd %s524, %s533
          %s535 = smul.addr %s531, 128
          %s536 = scalar_lea.hbm %s4, %s535
          %s537 = sshll.u32 %s527, 4
          %s538 = int_to_ptr.vmem [resolvable:$true] %s537
          %543 = dma.vmem_to_hbm [thread:$0]  %s538, 4096, %s536, %s524, 128, 128, 8
        $region56: #{residual_block.7} parent=35 // pred_fallthru
          _
      $region36: #{residual_block.7} parent=5 // pred_fallthru
        _
      %p544 = scmp.le.s32.totalorder 2, %s20
      // Predicated region
      $region57: #{residual_block.7} parent=5 // pred_check
        %p545 = pneg %p544
      $region58: #{residual_block.7} parent=5 // pred_check_branch
        %547 = sbr.rel (%p545) target = $region60
      $region59: #{residual_block.7} parent=5 // pred_region
        %s548 = ssub.s32 %s20, 2
        // Predicated region
        $region61: #{residual_block.7} parent=59 // pred_check
          %p549 = pneg %p143
        $region62: #{residual_block.7} parent=59 // pred_check_branch
          %551 = sbr.rel (%p549) target = $region64
        $region63: #{residual_block.7} parent=59 // pred_region
          %s552 = sand.u32 %s128, 1
          %s553 = scalar_lea.sflag [#allocation4], %s552
          %s554 = sand.u32 %s128, 1
          %s555 = smul.addr %s554, 256
          %s556 = scalar_lea.vmem [#allocation10], %s555
          %557 = dma.done %s553, 4096
        $region64: #{residual_block.7} parent=59 // pred_fallthru
          _
      $region60: #{residual_block.7} parent=5 // pred_fallthru
        _
    $region6: #{residual_block.7} parent=1 // loop_footer
      %s24 = sadd.s32 1, %s20
    $region7: #{residual_block.7} parent=1 // loop_footer_branch
      %19 = sbr.rel target = $region3
    $region8: #{residual_block.7} parent=1 // loop_exit
      _
    %558 = vsyncpa [#allocation3], 1
    %s559 = scalar_lea.sflag [#allocation3], 1
    %560 = vsyncpa %s559, 1
    %561 = vsyncpa [#allocation6], 1
    %s562 = scalar_lea.sflag [#allocation6], 1
    %563 = vsyncpa %s562, 1
    %564 = vsyncpa [#allocation9], 1
    %565 = vsyncpa [#allocation4], 1
    %s566 = scalar_lea.sflag [#allocation4], 1
    %567 = vsyncpa %s566, 1

</llo_original>
